<compile_context>
chip_gen: v5e
topology: v5e:2x2
jax: 0.10.0
libtpu: 0.0.40
codegen_flags: <defaults>
</compile_context>

<pallas_src>
import functools

import jax
import jax.numpy as jnp
from jax.experimental import pallas as pl
from jax.experimental.pallas import tpu as pltpu


# ----------------------------- kernel -------------------------------------- #

def _layernorm(x, gamma, beta, eps=1e-5):
    mean = jnp.mean(x, axis=-1, keepdims=True)
    var = jnp.mean((x - mean) ** 2, axis=-1, keepdims=True)
    return (x - mean) * jax.lax.rsqrt(var + eps) * gamma + beta


def stack_kernel(mask_ref, x_ref,
                 wqkv_ref, wu_ref, bu_ref, ln1g_ref, ln1b_ref,
                 w1_ref, b1_ref, w2_ref, b2_ref, ln2g_ref, ln2b_ref,
                 wp_ref, bp_ref,
                 o_ref, h_scratch, *, heads):
    """Grid = (batch, depth). One step = one decoder block on one batch row-chunk.

    The activation stays resident in h_scratch across the layer axis; the final
    layer also runs the fused output head (toprobs + exact f32 log_softmax).
    """
    d = pl.program_id(1)
    t, emb = h_scratch.shape
    H = heads

    @pl.when(d == 0)
    def _():
        h_scratch[...] = x_ref[...].astype(jnp.float32)

    h = h_scratch[...]                                        # (t, emb) f32

    # ---- QKV projection: ONE head-batched bf16 einsum (no per-head loop). ----
    # wqkv is (H, emb, 3*emb) with the 1/k**0.25 q/k scale folded in at init,
    # so splitting q/k/v is a plain 32-aligned last-dim slice (no relayout).
    h_b = jnp.broadcast_to(h, (H, t, emb)).astype(jnp.bfloat16)
    qkv = jnp.einsum('htc,hcd->htd', h_b, wqkv_ref[...],
                     preferred_element_type=jnp.float32)      # (H, t, 3*emb) f32

    q = qkv[:, :, 0 * emb:1 * emb]                            # (H, t, emb)
    k = qkv[:, :, 1 * emb:2 * emb]
    v = qkv[:, :, 2 * emb:3 * emb]

    # ---- causal attention: batched over heads, f32 softmax, additive mask ----
    scores = jnp.einsum('hqd,hkd->hqk', q, k,
                        preferred_element_type=jnp.float32)   # (H, t, t)
    scores = scores + mask_ref[...]                           # precomputed (t, t) mask
    m = jnp.max(scores, axis=-1, keepdims=True)
    e = jnp.exp(scores - m)
    l = jnp.sum(e, axis=-1, keepdims=True)
    p = e * pl.reciprocal(l, approx=True)                     # stays f32 (no bf16 trip)

    ctx = jnp.einsum('hqk,hkd->hqd', p, v,
                     preferred_element_type=jnp.float32)      # (H, t, emb)

    # ---- unify: head-batched (emb,emb) matmuls + sum over heads == concat @ Wu ----
    att = jnp.einsum('hqd,hdo->hqo', ctx.astype(jnp.bfloat16), wu_ref[...],
                     preferred_element_type=jnp.float32)      # (H, t, emb)
    att = jnp.sum(att, axis=0) + bu_ref[...]                  # (t, emb)

    x1 = _layernorm(att + h, ln1g_ref[...], ln1b_ref[...])

    # ---- 4x MLP with ReLU ----
    hid = jnp.dot(x1.astype(jnp.bfloat16), w1_ref[...],
                  preferred_element_type=jnp.float32) + b1_ref[...]
    hid = jnp.maximum(hid, 0.0)
    ff = jnp.dot(hid.astype(jnp.bfloat16), w2_ref[...],
                 preferred_element_type=jnp.float32) + b2_ref[...]

    out = _layernorm(ff + x1, ln2g_ref[...], ln2b_ref[...])
    h_scratch[...] = out

    # ---- fused output head: toprobs + exact f32 log_softmax (last layer only) ----
    @pl.when(d == pl.num_programs(1) - 1)
    def _():
        logits = jnp.dot(out.astype(jnp.bfloat16), wp_ref[...],
                         preferred_element_type=jnp.float32) + bp_ref[...]
        mm = jnp.max(logits, axis=-1, keepdims=True)
        s = logits - mm
        lse = jnp.log(jnp.sum(jnp.exp(s), axis=-1, keepdims=True))
        o_ref[...] = (s - lse).astype(o_ref.dtype)


# ----------------------------- wrapper -------------------------------------- #

def _layer_map(bi, d, *, nz):
    return (d,) + (0,) * nz


def _nbytes(shape, dtype):
    n = 1
    for s in shape:
        n *= int(s)
    return n * jnp.dtype(dtype).itemsize


def gen_trf_forward(params, tokens, *, heads, num_tokens):
    # Embedding lookups (gather) are glue; kept in plain JAX.
    tok = jnp.take(params['tok_emb'], tokens, axis=0)         # (b, t, k)
    b, t, k = tok.shape
    x2d = (tok + params['pos_emb'][None, :t, :]).reshape(b * t, k)

    sp = params['stack']
    depth = sp['wqkv'].shape[0]
    mask = params['mask'][:t, :t]                             # additive causal mask

    weight_order = ('wqkv', 'wu', 'bu', 'ln1g', 'ln1b',
                    'w1', 'b1', 'w2', 'b2', 'ln2g', 'ln2b')
    weights = [sp[n] for n in weight_order]
    wp, bp = params['wp'], params['bp']

    def batch_map(bi, d):
        return (bi, 0)

    def const_map(bi, d):
        return (0, 0)

    in_specs = [pl.BlockSpec((t, t), const_map),              # additive causal mask
                pl.BlockSpec((t, k), batch_map)]              # input activation rows
    for w in weights:
        in_specs.append(pl.BlockSpec((None,) + w.shape[1:],
                                     functools.partial(_layer_map, nz=w.ndim - 1)))
    in_specs += [pl.BlockSpec(wp.shape, const_map),
                 pl.BlockSpec(bp.shape, const_map)]

    out_spec = pl.BlockSpec((t, num_tokens), batch_map)

    # VMEM budget: double-buffered pipeline blocks + resident activation scratch,
    # with 2x headroom, capped at 32 MiB (safe on v7x's 64 MiB/TC and on v5e/v6e).
    blk = _nbytes((t, k), x2d.dtype) + _nbytes((t, t), mask.dtype)
    for w in weights:
        blk += _nbytes(w.shape[1:], w.dtype)
    blk += _nbytes(wp.shape, wp.dtype) + _nbytes(bp.shape, bp.dtype)
    blk += _nbytes((t, num_tokens), jnp.float32)
    need = 2 * blk + _nbytes((t, k), jnp.float32)
    vmem_limit = int(min(32 << 20, max(4 << 20, 2 * need)))

    out2d = pl.pallas_call(
        functools.partial(stack_kernel, heads=heads),
        grid=(b, depth),
        out_shape=jax.ShapeDtypeStruct((b * t, num_tokens), jnp.float32),
        in_specs=in_specs,
        out_specs=out_spec,
        scratch_shapes=[pltpu.VMEM((t, k), jnp.float32)],     # resident activation
        compiler_params=pltpu.CompilerParams(
            dimension_semantics=("parallel", "arbitrary"),    # batch x layers
            vmem_limit_bytes=vmem_limit),
    )(mask, x2d, *weights, wp, bp)

    return out2d.reshape(b, t, num_tokens)


# ----------------------------- parameters ----------------------------------- #

def init_params(key, k, heads, seq_length, num_tokens, depth):
    sc = 0.02
    keys = jax.random.split(key, 9)

    def rnd(kk, shape):
        return jax.random.normal(kk, shape, jnp.float32) * sc

    # Per-head weights stacked on a leading head axis; 1/k**0.25 q/k scale folded in.
    scale = 1.0 / (k ** 0.25)
    wq = rnd(keys[3], (depth, heads, k, k)) * scale
    wk = rnd(keys[4], (depth, heads, k, k)) * scale
    wv = rnd(keys[5], (depth, heads, k, k))
    wqkv = jnp.concatenate([wq, wk, wv], axis=-1).astype(jnp.bfloat16)  # (D,H,k,3k)

    # Additive causal mask: 0 on/below the diagonal, large negative above.
    row = jax.lax.broadcasted_iota(jnp.int32, (seq_length, seq_length), 0)
    col = jax.lax.broadcasted_iota(jnp.int32, (seq_length, seq_length), 1)
    mask = jnp.where(col <= row, 0.0, -1e30).astype(jnp.float32)

    return {
        'tok_emb': rnd(keys[0], (num_tokens, k)),
        'pos_emb': rnd(keys[1], (seq_length, k)),
        'wp': rnd(keys[2], (k, num_tokens)).astype(jnp.bfloat16),
        'bp': jnp.zeros((1, num_tokens), jnp.float32),
        'mask': mask,
        'stack': {
            'wqkv': wqkv,
            'wu':   rnd(keys[6], (depth, heads, k, k)).astype(jnp.bfloat16),
            'bu':   jnp.zeros((depth, 1, k), jnp.float32),
            'ln1g': jnp.ones((depth, 1, k), jnp.float32),
            'ln1b': jnp.zeros((depth, 1, k), jnp.float32),
            'w1':   rnd(keys[7], (depth, k, 4 * k)).astype(jnp.bfloat16),
            'b1':   jnp.zeros((depth, 1, 4 * k), jnp.float32),
            'w2':   rnd(keys[8], (depth, 4 * k, k)).astype(jnp.bfloat16),
            'b2':   jnp.zeros((depth, 1, k), jnp.float32),
            'ln2g': jnp.ones((depth, 1, k), jnp.float32),
            'ln2b': jnp.zeros((depth, 1, k), jnp.float32),
        },
    }


# ----------------------------- main ------------------------------------------ #

if __name__ == "__main__":
    K = 32          # embedding dim
    HEADS = 4
    SEQ = 8         # seq_length (== t)
    NUM_TOKENS = 16
    DEPTH = 8
    BATCH = 2

    root = jax.random.PRNGKey(0)
    pkey, xkey = jax.random.split(root)
    params = init_params(pkey, K, HEADS, SEQ, NUM_TOKENS, DEPTH)
    tokens = jax.random.randint(xkey, (BATCH, SEQ), 0, NUM_TOKENS, dtype=jnp.int32)

    fwd = jax.jit(functools.partial(gen_trf_forward, heads=HEADS,
                                    num_tokens=NUM_TOKENS))
    out = fwd(params, tokens)
    jax.block_until_ready(out)

    assert out.shape == (BATCH, SEQ, NUM_TOKENS)
    # log_softmax rows must sum (in prob space) to ~1
    assert bool(jnp.all(jnp.abs(jnp.sum(jnp.exp(out), axis=-1) - 1.0) < 1e-4))
    print("KERNEL_OK")
</pallas_src>

<mosaic_0001>
module attributes {stable_mosaic.version = 11 : i64} {
  func.func @stack_kernel(%arg0: i32, %arg1: i32, %arg2: memref<8x8xf32, #tpu.memory_space<vmem>>, %arg3: memref<8x32xf32, #tpu.memory_space<vmem>>, %arg4: memref<1x4x32x96xbf16, #tpu.memory_space<vmem>>, %arg5: memref<1x4x32x32xbf16, #tpu.memory_space<vmem>>, %arg6: memref<1x1x32xf32, #tpu.memory_space<vmem>>, %arg7: memref<1x1x32xf32, #tpu.memory_space<vmem>>, %arg8: memref<1x1x32xf32, #tpu.memory_space<vmem>>, %arg9: memref<1x32x128xbf16, #tpu.memory_space<vmem>>, %arg10: memref<1x1x128xf32, #tpu.memory_space<vmem>>, %arg11: memref<1x128x32xbf16, #tpu.memory_space<vmem>>, %arg12: memref<1x1x32xf32, #tpu.memory_space<vmem>>, %arg13: memref<1x1x32xf32, #tpu.memory_space<vmem>>, %arg14: memref<1x1x32xf32, #tpu.memory_space<vmem>>, %arg15: memref<32x16xbf16, #tpu.memory_space<vmem>>, %arg16: memref<1x16xf32, #tpu.memory_space<vmem>>, %arg17: memref<8x16xf32, #tpu.memory_space<vmem>>, %arg18: memref<8x32xf32, #tpu.memory_space<vmem>>) attributes {dimension_semantics = [#tpu.dimension_semantics<parallel>, #tpu.dimension_semantics<arbitrary>], iteration_bounds = array<i64: 2, 8>, scalar_prefetch = 0 : i64, scratch_operands = 1 : i64, tpu.core_type = #tpu.core_type<tc>, window_params = [{pipeline_mode = #tpu.pipeline_mode<synchronous>, transform_indices = @transform_0, window_bounds = array<i64: 8, 8>}, {transform_indices = @transform_1, window_bounds = array<i64: 8, 32>}, {transform_indices = @transform_2, window_bounds = array<i64: 1, 4, 32, 96>}, {transform_indices = @transform_3, window_bounds = array<i64: 1, 4, 32, 32>}, {transform_indices = @transform_4, window_bounds = array<i64: 1, 1, 32>}, {transform_indices = @transform_5, window_bounds = array<i64: 1, 1, 32>}, {transform_indices = @transform_6, window_bounds = array<i64: 1, 1, 32>}, {transform_indices = @transform_7, window_bounds = array<i64: 1, 32, 128>}, {transform_indices = @transform_8, window_bounds = array<i64: 1, 1, 128>}, {transform_indices = @transform_9, window_bounds = array<i64: 1, 128, 32>}, {transform_indices = @transform_10, window_bounds = array<i64: 1, 1, 32>}, {transform_indices = @transform_11, window_bounds = array<i64: 1, 1, 32>}, {transform_indices = @transform_12, window_bounds = array<i64: 1, 1, 32>}, {pipeline_mode = #tpu.pipeline_mode<synchronous>, transform_indices = @transform_13, window_bounds = array<i64: 32, 16>}, {pipeline_mode = #tpu.pipeline_mode<synchronous>, transform_indices = @transform_14, window_bounds = array<i64: 1, 16>}, {transform_indices = @transform_15, window_bounds = array<i64: 8, 16>}]} {
    %c0_i32 = arith.constant 0 : i32
    %0 = arith.cmpi eq, %arg1, %c0_i32 : i32
    %1 = arith.extui %0 : i1 to i32
    %c0_i32_0 = arith.constant 0 : i32
    %2 = arith.cmpi ne, %1, %c0_i32_0 : i32
    scf.if %2 {
      %c0_61 = arith.constant 0 : index
      %c0_62 = arith.constant 0 : index
      %114 = vector.load %arg3[%c0_61, %c0_62] : memref<8x32xf32, #tpu.memory_space<vmem>>, vector<8x32xf32>
      %c0_63 = arith.constant 0 : index
      %c0_64 = arith.constant 0 : index
      %115 = vector.load %arg18[%c0_63, %c0_64] : memref<8x32xf32, #tpu.memory_space<vmem>>, vector<8x32xf32>
      tpu.vector_store %arg18[%c0_63, %c0_64], %114 {strides = array<i32>} : memref<8x32xf32, #tpu.memory_space<vmem>>, vector<8x32xf32>,
    } else {
    }
    %c0 = arith.constant 0 : index
    %c0_1 = arith.constant 0 : index
    %3 = vector.load %arg18[%c0, %c0_1] : memref<8x32xf32, #tpu.memory_space<vmem>>, vector<8x32xf32>
    %4 = vector.shape_cast %3 : vector<8x32xf32> to vector<1x8x32xf32>
    %5 = vector.broadcast %4 : vector<1x8x32xf32> to vector<4x8x32xf32>
    %6 = arith.truncf %5 : vector<4x8x32xf32> to vector<4x8x32xbf16>
    %c0_2 = arith.constant 0 : index
    %c0_3 = arith.constant 0 : index
    %c0_4 = arith.constant 0 : index
    %c0_5 = arith.constant 0 : index
    %7 = vector.load %arg4[%c0_2, %c0_3, %c0_4, %c0_5] : memref<1x4x32x96xbf16, #tpu.memory_space<vmem>>, vector<1x4x32x96xbf16>
    %8 = vector.shape_cast %7 : vector<1x4x32x96xbf16> to vector<4x32x96xbf16>
    "tpu.trace_start"() <{level = 10 : i32, message = "htc,hcd->htd"}> : () -> ()
    %cst = arith.constant dense<0.000000e+00> : vector<4x8x96xf32>
    %9 = tpu.matmul %6, %8, %cst {dimension_numbers = #tpu.dot_dimension_numbers<[2], [1], [1], [2], [0, 0, 0, 1, 1, 2], [0], [0]>} : vector<4x8x32xbf16>, vector<4x32x96xbf16>, vector<4x8x96xf32> -> vector<4x8x96xf32>
    "tpu.trace_stop"() : () -> ()
    %10 = vector.extract_strided_slice %9 {offsets = [0, 0, 0], sizes = [4, 8, 32], strides = [1, 1, 1]} : vector<4x8x96xf32> to vector<4x8x32xf32>
    %11 = vector.extract_strided_slice %9 {offsets = [0, 0, 32], sizes = [4, 8, 32], strides = [1, 1, 1]} : vector<4x8x96xf32> to vector<4x8x32xf32>
    %12 = vector.extract_strided_slice %9 {offsets = [0, 0, 64], sizes = [4, 8, 32], strides = [1, 1, 1]} : vector<4x8x96xf32> to vector<4x8x32xf32>
    "tpu.trace_start"() <{level = 10 : i32, message = "hqd,hkd->hqk"}> : () -> ()
    %cst_6 = arith.constant dense<0.000000e+00> : vector<4x8x8xf32>
    %13 = tpu.matmul %10, %11, %cst_6 {dimension_numbers = #tpu.dot_dimension_numbers<[2], [2], [1], [1], [0, 0, 0, 1, 1, 1], [0], [0]>} : vector<4x8x32xf32>, vector<4x8x32xf32>, vector<4x8x8xf32> -> vector<4x8x8xf32>
    "tpu.trace_stop"() : () -> ()
    %c0_7 = arith.constant 0 : index
    %c0_8 = arith.constant 0 : index
    %14 = vector.load %arg2[%c0_7, %c0_8] : memref<8x8xf32, #tpu.memory_space<vmem>>, vector<8x8xf32>
    %15 = vector.shape_cast %14 : vector<8x8xf32> to vector<1x8x8xf32>
    %16 = vector.broadcast %15 : vector<1x8x8xf32> to vector<4x8x8xf32>
    %17 = arith.addf %13, %16 : vector<4x8x8xf32>
    %cst_9 = arith.constant dense<0xFF800000> : vector<4x8xf32>
    %18 = vector.multi_reduction <maximumf>, %17, %cst_9 [2] : vector<4x8x8xf32> to vector<4x8xf32>
    %19 = vector.shape_cast %18 : vector<4x8xf32> to vector<4x8x1xf32>
    %20 = vector.broadcast %19 : vector<4x8x1xf32> to vector<4x8x8xf32>
    %21 = arith.subf %17, %20 : vector<4x8x8xf32>
    %22 = math.exp %21 : vector<4x8x8xf32>
    %cst_10 = arith.constant dense<0.000000e+00> : vector<4x8xf32>
    %23 = vector.multi_reduction <add>, %22, %cst_10 [2] : vector<4x8x8xf32> to vector<4x8xf32>
    %24 = vector.shape_cast %23 : vector<4x8xf32> to vector<4x8x1xf32>
    %25 = tpu.reciprocal %24 {approx = true} : vector<4x8x1xf32> -> vector<4x8x1xf32>
    %26 = vector.broadcast %25 : vector<4x8x1xf32> to vector<4x8x8xf32>
    %27 = arith.mulf %22, %26 : vector<4x8x8xf32>
    "tpu.trace_start"() <{level = 10 : i32, message = "hqk,hkd->hqd"}> : () -> ()
    %cst_11 = arith.constant dense<0.000000e+00> : vector<4x8x32xf32>
    %28 = tpu.matmul %27, %12, %cst_11 {dimension_numbers = #tpu.dot_dimension_numbers<[2], [1], [1], [2], [0, 0, 0, 1, 1, 2], [0], [0]>} : vector<4x8x8xf32>, vector<4x8x32xf32>, vector<4x8x32xf32> -> vector<4x8x32xf32>
    "tpu.trace_stop"() : () -> ()
    %29 = arith.truncf %28 : vector<4x8x32xf32> to vector<4x8x32xbf16>
    %c0_12 = arith.constant 0 : index
    %c0_13 = arith.constant 0 : index
    %c0_14 = arith.constant 0 : index
    %c0_15 = arith.constant 0 : index
    %30 = vector.load %arg5[%c0_12, %c0_13, %c0_14, %c0_15] : memref<1x4x32x32xbf16, #tpu.memory_space<vmem>>, vector<1x4x32x32xbf16>
    %31 = vector.shape_cast %30 : vector<1x4x32x32xbf16> to vector<4x32x32xbf16>
    "tpu.trace_start"() <{level = 10 : i32, message = "hqd,hdo->hqo"}> : () -> ()
    %cst_16 = arith.constant dense<0.000000e+00> : vector<4x8x32xf32>
    %32 = tpu.matmul %29, %31, %cst_16 {dimension_numbers = #tpu.dot_dimension_numbers<[2], [1], [1], [2], [0, 0, 0, 1, 1, 2], [0], [0]>} : vector<4x8x32xbf16>, vector<4x32x32xbf16>, vector<4x8x32xf32> -> vector<4x8x32xf32>
    "tpu.trace_stop"() : () -> ()
    %cst_17 = arith.constant dense<0.000000e+00> : vector<8x32xf32>
    %33 = vector.multi_reduction <add>, %32, %cst_17 [0] : vector<4x8x32xf32> to vector<8x32xf32>
    %c0_18 = arith.constant 0 : index
    %c0_19 = arith.constant 0 : index
    %c0_20 = arith.constant 0 : index
    %34 = vector.load %arg6[%c0_18, %c0_19, %c0_20] : memref<1x1x32xf32, #tpu.memory_space<vmem>>, vector<1x1x32xf32>
    %35 = vector.shape_cast %34 : vector<1x1x32xf32> to vector<1x32xf32>
    %36 = vector.broadcast %35 : vector<1x32xf32> to vector<8x32xf32>
    %37 = arith.addf %33, %36 : vector<8x32xf32>
    %38 = arith.addf %37, %3 : vector<8x32xf32>
    %c0_21 = arith.constant 0 : index
    %c0_22 = arith.constant 0 : index
    %c0_23 = arith.constant 0 : index
    %39 = vector.load %arg7[%c0_21, %c0_22, %c0_23] : memref<1x1x32xf32, #tpu.memory_space<vmem>>, vector<1x1x32xf32>
    %40 = vector.shape_cast %39 : vector<1x1x32xf32> to vector<1x32xf32>
    %c0_24 = arith.constant 0 : index
    %c0_25 = arith.constant 0 : index
    %c0_26 = arith.constant 0 : index
    %41 = vector.load %arg8[%c0_24, %c0_25, %c0_26] : memref<1x1x32xf32, #tpu.memory_space<vmem>>, vector<1x1x32xf32>
    %42 = vector.shape_cast %41 : vector<1x1x32xf32> to vector<1x32xf32>
    %cst_27 = arith.constant dense<0.000000e+00> : vector<8xf32>
    %43 = vector.multi_reduction <add>, %38, %cst_27 [1] : vector<8x32xf32> to vector<8xf32>
    %44 = vector.shape_cast %43 : vector<8xf32> to vector<8x1xf32>
    %cst_28 = arith.constant 3.200000e+01 : f32
    %45 = vector.broadcast %cst_28 : f32 to vector<8x1xf32>
    %46 = arith.divf %44, %45 : vector<8x1xf32>
    %47 = vector.broadcast %46 : vector<8x1xf32> to vector<8x32xf32>
    %48 = arith.subf %38, %47 : vector<8x32xf32>
    %49 = arith.mulf %48, %48 : vector<8x32xf32>
    %cst_29 = arith.constant dense<0.000000e+00> : vector<8xf32>
    %50 = vector.multi_reduction <add>, %49, %cst_29 [1] : vector<8x32xf32> to vector<8xf32>
    %51 = vector.shape_cast %50 : vector<8xf32> to vector<8x1xf32>
    %cst_30 = arith.constant 3.200000e+01 : f32
    %52 = vector.broadcast %cst_30 : f32 to vector<8x1xf32>
    %53 = arith.divf %51, %52 : vector<8x1xf32>
    %54 = vector.broadcast %46 : vector<8x1xf32> to vector<8x32xf32>
    %55 = arith.subf %38, %54 : vector<8x32xf32>
    %cst_31 = arith.constant 9.99999974E-6 : f32
    %56 = vector.broadcast %cst_31 : f32 to vector<8x1xf32>
    %57 = arith.addf %53, %56 : vector<8x1xf32>
    %58 = math.rsqrt %57 : vector<8x1xf32>
    %59 = vector.broadcast %58 : vector<8x1xf32> to vector<8x32xf32>
    %60 = arith.mulf %55, %59 : vector<8x32xf32>
    %61 = vector.broadcast %40 : vector<1x32xf32> to vector<8x32xf32>
    %62 = arith.mulf %60, %61 : vector<8x32xf32>
    %63 = vector.broadcast %42 : vector<1x32xf32> to vector<8x32xf32>
    %64 = arith.addf %62, %63 : vector<8x32xf32>
    %65 = arith.truncf %64 : vector<8x32xf32> to vector<8x32xbf16>
    %c0_32 = arith.constant 0 : index
    %c0_33 = arith.constant 0 : index
    %c0_34 = arith.constant 0 : index
    %66 = vector.load %arg9[%c0_32, %c0_33, %c0_34] : memref<1x32x128xbf16, #tpu.memory_space<vmem>>, vector<1x32x128xbf16>
    %67 = vector.shape_cast %66 : vector<1x32x128xbf16> to vector<32x128xbf16>
    %cst_35 = arith.constant dense<0.000000e+00> : vector<8x128xf32>
    %68 = tpu.matmul %65, %67, %cst_35 {dimension_numbers = #tpu.dot_dimension_numbers<[1], [0], [0], [1], [0, 0, 1, 1], [], []>} : vector<8x32xbf16>, vector<32x128xbf16>, vector<8x128xf32> -> vector<8x128xf32>
    %c0_36 = arith.constant 0 : index
    %c0_37 = arith.constant 0 : index
    %c0_38 = arith.constant 0 : index
    %69 = vector.load %arg10[%c0_36, %c0_37, %c0_38] : memref<1x1x128xf32, #tpu.memory_space<vmem>>, vector<1x1x128xf32>
    %70 = vector.shape_cast %69 : vector<1x1x128xf32> to vector<1x128xf32>
    %71 = vector.broadcast %70 : vector<1x128xf32> to vector<8x128xf32>
    %72 = arith.addf %68, %71 : vector<8x128xf32>
    %cst_39 = arith.constant 0.000000e+00 : f32
    %73 = vector.broadcast %cst_39 : f32 to vector<8x128xf32>
    %74 = arith.maximumf %72, %73 : vector<8x128xf32>
    %75 = arith.truncf %74 : vector<8x128xf32> to vector<8x128xbf16>
    %c0_40 = arith.constant 0 : index
    %c0_41 = arith.constant 0 : index
    %c0_42 = arith.constant 0 : index
    %76 = vector.load %arg11[%c0_40, %c0_41, %c0_42] : memref<1x128x32xbf16, #tpu.memory_space<vmem>>, vector<1x128x32xbf16>
    %77 = vector.shape_cast %76 : vector<1x128x32xbf16> to vector<128x32xbf16>
    %cst_43 = arith.constant dense<0.000000e+00> : vector<8x32xf32>
    %78 = tpu.matmul %75, %77, %cst_43 {dimension_numbers = #tpu.dot_dimension_numbers<[1], [0], [0], [1], [0, 0, 1, 1], [], []>} : vector<8x128xbf16>, vector<128x32xbf16>, vector<8x32xf32> -> vector<8x32xf32>
    %c0_44 = arith.constant 0 : index
    %c0_45 = arith.constant 0 : index
    %c0_46 = arith.constant 0 : index
    %79 = vector.load %arg12[%c0_44, %c0_45, %c0_46] : memref<1x1x32xf32, #tpu.memory_space<vmem>>, vector<1x1x32xf32>
    %80 = vector.shape_cast %79 : vector<1x1x32xf32> to vector<1x32xf32>
    %81 = vector.broadcast %80 : vector<1x32xf32> to vector<8x32xf32>
    %82 = arith.addf %78, %81 : vector<8x32xf32>
    %83 = arith.addf %82, %64 : vector<8x32xf32>
    %c0_47 = arith.constant 0 : index
    %c0_48 = arith.constant 0 : index
    %c0_49 = arith.constant 0 : index
    %84 = vector.load %arg13[%c0_47, %c0_48, %c0_49] : memref<1x1x32xf32, #tpu.memory_space<vmem>>, vector<1x1x32xf32>
    %85 = vector.shape_cast %84 : vector<1x1x32xf32> to vector<1x32xf32>
    %c0_50 = arith.constant 0 : index
    %c0_51 = arith.constant 0 : index
    %c0_52 = arith.constant 0 : index
    %86 = vector.load %arg14[%c0_50, %c0_51, %c0_52] : memref<1x1x32xf32, #tpu.memory_space<vmem>>, vector<1x1x32xf32>
    %87 = vector.shape_cast %86 : vector<1x1x32xf32> to vector<1x32xf32>
    %cst_53 = arith.constant dense<0.000000e+00> : vector<8xf32>
    %88 = vector.multi_reduction <add>, %83, %cst_53 [1] : vector<8x32xf32> to vector<8xf32>
    %89 = vector.shape_cast %88 : vector<8xf32> to vector<8x1xf32>
    %cst_54 = arith.constant 3.200000e+01 : f32
    %90 = vector.broadcast %cst_54 : f32 to vector<8x1xf32>
    %91 = arith.divf %89, %90 : vector<8x1xf32>
    %92 = vector.broadcast %91 : vector<8x1xf32> to vector<8x32xf32>
    %93 = arith.subf %83, %92 : vector<8x32xf32>
    %94 = arith.mulf %93, %93 : vector<8x32xf32>
    %cst_55 = arith.constant dense<0.000000e+00> : vector<8xf32>
    %95 = vector.multi_reduction <add>, %94, %cst_55 [1] : vector<8x32xf32> to vector<8xf32>
    %96 = vector.shape_cast %95 : vector<8xf32> to vector<8x1xf32>
    %cst_56 = arith.constant 3.200000e+01 : f32
    %97 = vector.broadcast %cst_56 : f32 to vector<8x1xf32>
    %98 = arith.divf %96, %97 : vector<8x1xf32>
    %99 = vector.broadcast %91 : vector<8x1xf32> to vector<8x32xf32>
    %100 = arith.subf %83, %99 : vector<8x32xf32>
    %cst_57 = arith.constant 9.99999974E-6 : f32
    %101 = vector.broadcast %cst_57 : f32 to vector<8x1xf32>
    %102 = arith.addf %98, %101 : vector<8x1xf32>
    %103 = math.rsqrt %102 : vector<8x1xf32>
    %104 = vector.broadcast %103 : vector<8x1xf32> to vector<8x32xf32>
    %105 = arith.mulf %100, %104 : vector<8x32xf32>
    %106 = vector.broadcast %85 : vector<1x32xf32> to vector<8x32xf32>
    %107 = arith.mulf %105, %106 : vector<8x32xf32>
    %108 = vector.broadcast %87 : vector<1x32xf32> to vector<8x32xf32>
    %109 = arith.addf %107, %108 : vector<8x32xf32>
    %c0_58 = arith.constant 0 : index
    %c0_59 = arith.constant 0 : index
    %110 = vector.load %arg18[%c0_58, %c0_59] : memref<8x32xf32, #tpu.memory_space<vmem>>, vector<8x32xf32>
    tpu.vector_store %arg18[%c0_58, %c0_59], %109 {strides = array<i32>} : memref<8x32xf32, #tpu.memory_space<vmem>>, vector<8x32xf32>,
    %c7_i32 = arith.constant 7 : i32
    %111 = arith.cmpi eq, %arg1, %c7_i32 : i32
    %112 = arith.extui %111 : i1 to i32
    %c0_i32_60 = arith.constant 0 : i32
    %113 = arith.cmpi ne, %112, %c0_i32_60 : i32
    scf.if %113 {
      %114 = arith.truncf %109 : vector<8x32xf32> to vector<8x32xbf16>
      %c0_61 = arith.constant 0 : index
      %c0_62 = arith.constant 0 : index
      %115 = vector.load %arg15[%c0_61, %c0_62] : memref<32x16xbf16, #tpu.memory_space<vmem>>, vector<32x16xbf16>
      %cst_63 = arith.constant dense<0.000000e+00> : vector<8x16xf32>
      %116 = tpu.matmul %114, %115, %cst_63 {dimension_numbers = #tpu.dot_dimension_numbers<[1], [0], [0], [1], [0, 0, 1, 1], [], []>} : vector<8x32xbf16>, vector<32x16xbf16>, vector<8x16xf32> -> vector<8x16xf32>
      %c0_64 = arith.constant 0 : index
      %c0_65 = arith.constant 0 : index
      %117 = vector.load %arg16[%c0_64, %c0_65] : memref<1x16xf32, #tpu.memory_space<vmem>>, vector<1x16xf32>
      %118 = vector.broadcast %117 : vector<1x16xf32> to vector<8x16xf32>
      %119 = arith.addf %116, %118 : vector<8x16xf32>
      %cst_66 = arith.constant dense<0xFF800000> : vector<8xf32>
      %120 = vector.multi_reduction <maximumf>, %119, %cst_66 [1] : vector<8x16xf32> to vector<8xf32>
      %121 = vector.shape_cast %120 : vector<8xf32> to vector<8x1xf32>
      %122 = vector.broadcast %121 : vector<8x1xf32> to vector<8x16xf32>
      %123 = arith.subf %119, %122 : vector<8x16xf32>
      %124 = math.exp %123 : vector<8x16xf32>
      %cst_67 = arith.constant dense<0.000000e+00> : vector<8xf32>
      %125 = vector.multi_reduction <add>, %124, %cst_67 [1] : vector<8x16xf32> to vector<8xf32>
      %126 = vector.shape_cast %125 : vector<8xf32> to vector<8x1xf32>
      %127 = math.log %126 : vector<8x1xf32>
      %128 = vector.broadcast %127 : vector<8x1xf32> to vector<8x16xf32>
      %129 = arith.subf %123, %128 : vector<8x16xf32>
      %c0_68 = arith.constant 0 : index
      %c0_69 = arith.constant 0 : index
      %130 = vector.load %arg17[%c0_68, %c0_69] : memref<8x16xf32, #tpu.memory_space<vmem>>, vector<8x16xf32>
      tpu.vector_store %arg17[%c0_68, %c0_69], %129 {strides = array<i32>} : memref<8x16xf32, #tpu.memory_space<vmem>>, vector<8x16xf32>,
    } else {
    }
    return
  }
  func.func @transform_0(%arg0: i32, %arg1: i32) -> (i32, i32) {
    %c0_i32 = arith.constant 0 : i32
    %c0_i32_0 = arith.constant 0 : i32
    %c0_i32_1 = arith.constant 0 : i32
    return %c0_i32, %c0_i32_0 : i32, i32
  }
  func.func @transform_1(%arg0: i32, %arg1: i32) -> (i32, i32) {
    %c0_i32 = arith.constant 0 : i32
    %c0_i32_0 = arith.constant 0 : i32
    return %arg0, %c0_i32 : i32, i32
  }
  func.func @transform_2(%arg0: i32, %arg1: i32) -> (i32, i32, i32, i32) {
    %c0_i32 = arith.constant 0 : i32
    %c0_i32_0 = arith.constant 0 : i32
    %c0_i32_1 = arith.constant 0 : i32
    %c0_i32_2 = arith.constant 0 : i32
    return %arg1, %c0_i32, %c0_i32_0, %c0_i32_1 : i32, i32, i32, i32
  }
  func.func @transform_3(%arg0: i32, %arg1: i32) -> (i32, i32, i32, i32) {
    %c0_i32 = arith.constant 0 : i32
    %c0_i32_0 = arith.constant 0 : i32
    %c0_i32_1 = arith.constant 0 : i32
    %c0_i32_2 = arith.constant 0 : i32
    return %arg1, %c0_i32, %c0_i32_0, %c0_i32_1 : i32, i32, i32, i32
  }
  func.func @transform_4(%arg0: i32, %arg1: i32) -> (i32, i32, i32) {
    %c0_i32 = arith.constant 0 : i32
    %c0_i32_0 = arith.constant 0 : i32
    %c0_i32_1 = arith.constant 0 : i32
    return %arg1, %c0_i32, %c0_i32_0 : i32, i32, i32
  }
  func.func @transform_5(%arg0: i32, %arg1: i32) -> (i32, i32, i32) {
    %c0_i32 = arith.constant 0 : i32
    %c0_i32_0 = arith.constant 0 : i32
    %c0_i32_1 = arith.constant 0 : i32
    return %arg1, %c0_i32, %c0_i32_0 : i32, i32, i32
  }
  func.func @transform_6(%arg0: i32, %arg1: i32) -> (i32, i32, i32) {
    %c0_i32 = arith.constant 0 : i32
    %c0_i32_0 = arith.constant 0 : i32
    %c0_i32_1 = arith.constant 0 : i32
    return %arg1, %c0_i32, %c0_i32_0 : i32, i32, i32
  }
  func.func @transform_7(%arg0: i32, %arg1: i32) -> (i32, i32, i32) {
    %c0_i32 = arith.constant 0 : i32
    %c0_i32_0 = arith.constant 0 : i32
    %c0_i32_1 = arith.constant 0 : i32
    return %arg1, %c0_i32, %c0_i32_0 : i32, i32, i32
  }
  func.func @transform_8(%arg0: i32, %arg1: i32) -> (i32, i32, i32) {
    %c0_i32 = arith.constant 0 : i32
    %c0_i32_0 = arith.constant 0 : i32
    %c0_i32_1 = arith.constant 0 : i32
    return %arg1, %c0_i32, %c0_i32_0 : i32, i32, i32
  }
  func.func @transform_9(%arg0: i32, %arg1: i32) -> (i32, i32, i32) {
    %c0_i32 = arith.constant 0 : i32
    %c0_i32_0 = arith.constant 0 : i32
    %c0_i32_1 = arith.constant 0 : i32
    return %arg1, %c0_i32, %c0_i32_0 : i32, i32, i32
  }
  func.func @transform_10(%arg0: i32, %arg1: i32) -> (i32, i32, i32) {
    %c0_i32 = arith.constant 0 : i32
    %c0_i32_0 = arith.constant 0 : i32
    %c0_i32_1 = arith.constant 0 : i32
    return %arg1, %c0_i32, %c0_i32_0 : i32, i32, i32
  }
  func.func @transform_11(%arg0: i32, %arg1: i32) -> (i32, i32, i32) {
    %c0_i32 = arith.constant 0 : i32
    %c0_i32_0 = arith.constant 0 : i32
    %c0_i32_1 = arith.constant 0 : i32
    return %arg1, %c0_i32, %c0_i32_0 : i32, i32, i32
  }
  func.func @transform_12(%arg0: i32, %arg1: i32) -> (i32, i32, i32) {
    %c0_i32 = arith.constant 0 : i32
    %c0_i32_0 = arith.constant 0 : i32
    %c0_i32_1 = arith.constant 0 : i32
    return %arg1, %c0_i32, %c0_i32_0 : i32, i32, i32
  }
  func.func @transform_13(%arg0: i32, %arg1: i32) -> (i32, i32) {
    %c0_i32 = arith.constant 0 : i32
    %c0_i32_0 = arith.constant 0 : i32
    %c0_i32_1 = arith.constant 0 : i32
    return %c0_i32, %c0_i32_0 : i32, i32
  }
  func.func @transform_14(%arg0: i32, %arg1: i32) -> (i32, i32) {
    %c0_i32 = arith.constant 0 : i32
    %c0_i32_0 = arith.constant 0 : i32
    %c0_i32_1 = arith.constant 0 : i32
    return %c0_i32, %c0_i32_0 : i32, i32
  }
  func.func @transform_15(%arg0: i32, %arg1: i32) -> (i32, i32) {
    %c0_i32 = arith.constant 0 : i32
    %c0_i32_0 = arith.constant 0 : i32
    return %arg0, %c0_i32 : i32, i32
  }
}

</mosaic_0001>

<llo_original>
// kernel: gen_trf_forward.1
$region0: #{gen_trf_forward.1}
  #allocation0 [shape = 'u32[]', space=smem, size = 0x4, offset = 0x4, fixed_abs, tag = 'smem constant byte address 0x4 - core index']
  #allocation1 [shape = 'u32[72,128]{1,0:T(1,128)}', space=vmem, size = 0x9000, scoped, tag = 'internal scratch']
  #allocation2 [shape = 'f32[8,32]{1,0:T(8,128)}', space=vmem, size = 0x1000, scoped, tag = 'scratch operand']
  %s0 = inlined_call_operand.vmem [shape: f32[8,8], index: 0, kind: input, shape index: {}]
  %s1 = inlined_call_operand.vmem [shape: f32[16,32], index: 1, kind: input, shape index: {}]
  %s2 = inlined_call_operand.vmem [shape: bf16[8,4,32,96], index: 2, kind: input, shape index: {}]
  %s3 = inlined_call_operand.hbm [shape: bf16[8,4,32,32], index: 3, kind: input, shape index: {}]
  %s4 = inlined_call_operand.vmem [shape: f32[8,1,32], index: 4, kind: input, shape index: {}]
  %s5 = inlined_call_operand.vmem [shape: f32[8,1,32], index: 5, kind: input, shape index: {}]
  %s6 = inlined_call_operand.vmem [shape: f32[8,1,32], index: 6, kind: input, shape index: {}]
  %s7 = inlined_call_operand.vmem [shape: bf16[8,32,128], index: 7, kind: input, shape index: {}]
  %s8 = inlined_call_operand.vmem [shape: f32[8,1,128], index: 8, kind: input, shape index: {}]
  %s9 = inlined_call_operand.vmem [shape: bf16[8,128,32], index: 9, kind: input, shape index: {}]
  %s10 = inlined_call_operand.vmem [shape: f32[8,1,32], index: 10, kind: input, shape index: {}]
  %s11 = inlined_call_operand.vmem [shape: f32[8,1,32], index: 11, kind: input, shape index: {}]
  %s12 = inlined_call_operand.vmem [shape: f32[8,1,32], index: 12, kind: input, shape index: {}]
  %s13 = inlined_call_operand.vmem [shape: bf16[32,16], index: 13, kind: input, shape index: {}]
  %s14 = inlined_call_operand.vmem [shape: f32[1,16], index: 14, kind: input, shape index: {}]
  %s15 = inlined_call_operand.hbm [shape: f32[16,16], index: 15, kind: output, shape index: {}]
  %s16 = sld [smem:[#allocation0]]
  $region105: #{gen_trf_forward.1} parent=0
    _
  %s18 = ssub.s32 1, %s16
  %s19 = scalar_select 0, %s18, %s16
  $region1: #{gen_trf_forward.1} parent=0
    #allocation3 [shape = 'u8[65536]{0}', space=vmem, size = 0x10000, scoped, tag = 'input window, operand 3']
    #allocation4 [shape = 's32[2]{0}', space=sflag, size = 0x8, scoped, tag = 'scoped memory for gen_trf_forward.1']
    #allocation5 [shape = 's32[2]{0}', space=sflag, size = 0x8, scoped, tag = 'scoped memory for gen_trf_forward.1']
    #allocation6 [shape = 'u8[8192]{0}', space=vmem, size = 0x2000, scoped, tag = 'output window, operand 0']
    %20 = vsyncpa [#allocation4], 0
    %s21 = scalar_lea.sflag [#allocation4], 1
    %22 = vsyncpa %s21, 0
    %23 = vsyncpa [#allocation5], 0
    %s24 = scalar_lea.sflag [#allocation5], 1
    %25 = vsyncpa %s24, 0
    loop: start=0, step=1, limit=18
    $region2: #{gen_trf_forward.1} parent=1 // loop_pre_header
      _
    $region3: #{gen_trf_forward.1} parent=1 // loop_header
      %s27 = sphi 0, %s31
      %p28 = scmp.ge.s32.totalorder %s27, 18
      %s34 = sphi 0, %s46
      %s35 = sphi 0, %s42
      %s36 = sphi 0, %s34
      %s37 = sphi 0, %s35
      %s38 = sphi 0, %s36
      %s39 = sphi 0, %s37
      %s47 = sphi 0, %s47
      %s49 = sphi 0, %s47
      %s50 = sphi 0, %s49
      %s64 = sphi 0, %s50
      %s70 = sphi 0, %s72
      %s73 = sphi 0, %s70
      %s74 = sphi 0, %s73
      %s90 = sphi 0, %s74
      %s96 = sphi 0, %s98
      %s99 = sphi 0, %s96
      %s100 = sphi 0, %s99
      %s116 = sphi 0, %s100
      %s122 = sphi 0, %s124
      %s125 = sphi 0, %s122
      %s126 = sphi 0, %s125
      %s142 = sphi 0, %s126
      %s148 = sphi 0, %s150
      %s151 = sphi 0, %s148
      %s152 = sphi 0, %s151
      %s168 = sphi 0, %s152
      %s174 = sphi 0, %s176
      %s177 = sphi 0, %s174
      %s178 = sphi 0, %s177
      %s194 = sphi 0, %s178
      %s200 = sphi 0, %s202
      %s203 = sphi 0, %s200
      %s204 = sphi 0, %s203
      %s220 = sphi 0, %s204
      %s226 = sphi 0, %s228
      %s229 = sphi 0, %s226
      %s230 = sphi 0, %s229
      %s246 = sphi 0, %s230
      %s252 = sphi 0, %s254
      %s255 = sphi 0, %s252
      %s256 = sphi 0, %s255
      %s272 = sphi 0, %s256
      %s278 = sphi 0, %s280
      %s281 = sphi 0, %s278
      %s282 = sphi 0, %s281
      %s298 = sphi 0, %s282
      %s304 = sphi 0, %s306
      %s307 = sphi 0, %s304
      %s308 = sphi 0, %s307
      %s324 = sphi 0, %s308
      %s330 = sphi 0, %s332
      %s333 = sphi 0, %s330
      %s334 = sphi 0, %s333
      %s350 = sphi 0, %s334
      %s356 = sphi 0, %s358
      %s359 = sphi 0, %s356
      %s360 = sphi 0, %s359
      %s376 = sphi 0, %s360
      %s380 = sphi 0, %s380
      %s382 = sphi 0, %s380
      %s383 = sphi 0, %s382
      %s397 = sphi 0, %s383
      %s401 = sphi 0, %s401
      %s403 = sphi 0, %s401
      %s404 = sphi 0, %s403
      %s418 = sphi 0, %s404
      %s424 = sphi 0, %s426
      %s427 = sphi 0, %s424
      %s428 = sphi 0, %s427
      %s444 = sphi 0, %s428
    $region4: #{gen_trf_forward.1} parent=1 // loop_header_branch
      %30 = sbr.rel (%p28) target = $region8
    $region5: #{gen_trf_forward.1} parent=1 // loop_body
      %s32 = ssub.s32 %s27, 1
      %s33 = ssub.s32 %s27, 2
      %s40 = sadd.s32 1, %s35
      %p41 = scmp.ge.s32.totalorder %s40, 8
      %s42 = scalar_select %p41, 0, %s40
      %s43 = sadd.s32 1, %s34
      %s44 = scalar_select %p41, %s43, %s34
      %p45 = scmp.ge.s32.totalorder %s44, 2
      %s46 = scalar_select %p45, 0, %s44
      %s48 = sadd.s32 %s47, 1
      %p51 = scmp.eq.s32.totalorder %s27, 15
      %p52 = scmp.ne.s32.totalorder %s47, %s49
      %p53 = scmp.eq.s32.totalorder %s27, 0
      %p54 = por %p52, %p53
      %p55 = scmp.ne.s32.totalorder %s47, %s49
      %p56 = scmp.eq.s32.totalorder %s32, 15
      %p57 = por %p55, %p56
      %p58 = scmp.ne.s32.totalorder %s49, %s50
      %p59 = scmp.eq.s32.totalorder %s32, 0
      %p60 = por %p58, %p59
      %p61 = scmp.ne.s32.totalorder %s49, %s50
      %p62 = scmp.eq.s32.totalorder %s33, 15
      %p63 = por %p61, %p62
      %p65 = scmp.ne.s32.totalorder %s50, %s64
      %p66 = scmp.eq.s32.totalorder %s33, 0
      %p67 = por %p65, %p66
      %s68 = ssub.s32 %s34, %s46
      %p69 = scmp.eq.s32.totalorder %s68, 0
      %s71 = sadd.s32 %s70, 1
      %s72 = scalar_select %p69, %s70, %s71
      %p75 = pneg %p69
      %p76 = scmp.eq.s32.totalorder %s27, 15
      %p77 = por %p75, %p76
      %p78 = scmp.ne.s32.totalorder %s70, %s73
      %p79 = scmp.eq.s32.totalorder %s27, 0
      %p80 = por %p78, %p79
      %p81 = scmp.ne.s32.totalorder %s70, %s73
      %p82 = scmp.eq.s32.totalorder %s32, 15
      %p83 = por %p81, %p82
      %p84 = scmp.ne.s32.totalorder %s73, %s74
      %p85 = scmp.eq.s32.totalorder %s32, 0
      %p86 = por %p84, %p85
      %p87 = scmp.ne.s32.totalorder %s73, %s74
      %p88 = scmp.eq.s32.totalorder %s33, 15
      %p89 = por %p87, %p88
      %p91 = scmp.ne.s32.totalorder %s74, %s90
      %p92 = scmp.eq.s32.totalorder %s33, 0
      %p93 = por %p91, %p92
      %s94 = ssub.s32 %s35, %s42
      %p95 = scmp.eq.s32.totalorder %s94, 0
      %s97 = sadd.s32 %s96, 1
      %s98 = scalar_select %p95, %s96, %s97
      %p101 = pneg %p95
      %p102 = scmp.eq.s32.totalorder %s27, 15
      %p103 = por %p101, %p102
      %p104 = scmp.ne.s32.totalorder %s96, %s99
      %p105 = scmp.eq.s32.totalorder %s27, 0
      %p106 = por %p104, %p105
      %p107 = scmp.ne.s32.totalorder %s96, %s99
      %p108 = scmp.eq.s32.totalorder %s32, 15
      %p109 = por %p107, %p108
      %p110 = scmp.ne.s32.totalorder %s99, %s100
      %p111 = scmp.eq.s32.totalorder %s32, 0
      %p112 = por %p110, %p111
      %p113 = scmp.ne.s32.totalorder %s99, %s100
      %p114 = scmp.eq.s32.totalorder %s33, 15
      %p115 = por %p113, %p114
      %p117 = scmp.ne.s32.totalorder %s100, %s116
      %p118 = scmp.eq.s32.totalorder %s33, 0
      %p119 = por %p117, %p118
      %s120 = ssub.s32 %s35, %s42
      %p121 = scmp.eq.s32.totalorder %s120, 0
      %s123 = sadd.s32 %s122, 1
      %s124 = scalar_select %p121, %s122, %s123
      %p127 = pneg %p121
      %p128 = scmp.eq.s32.totalorder %s27, 15
      %p129 = por %p127, %p128
      %p130 = scmp.ne.s32.totalorder %s122, %s125
      %p131 = scmp.eq.s32.totalorder %s27, 0
      %p132 = por %p130, %p131
      %p133 = scmp.ne.s32.totalorder %s122, %s125
      %p134 = scmp.eq.s32.totalorder %s32, 15
      %p135 = por %p133, %p134
      %p136 = scmp.ne.s32.totalorder %s125, %s126
      %p137 = scmp.eq.s32.totalorder %s32, 0
      %p138 = por %p136, %p137
      %p139 = scmp.ne.s32.totalorder %s125, %s126
      %p140 = scmp.eq.s32.totalorder %s33, 15
      %p141 = por %p139, %p140
      %p143 = scmp.ne.s32.totalorder %s126, %s142
      %p144 = scmp.eq.s32.totalorder %s33, 0
      %p145 = por %p143, %p144
      %s146 = ssub.s32 %s35, %s42
      %p147 = scmp.eq.s32.totalorder %s146, 0
      %s149 = sadd.s32 %s148, 1
      %s150 = scalar_select %p147, %s148, %s149
      %p153 = pneg %p147
      %p154 = scmp.eq.s32.totalorder %s27, 15
      %p155 = por %p153, %p154
      %p156 = scmp.ne.s32.totalorder %s148, %s151
      %p157 = scmp.eq.s32.totalorder %s27, 0
      %p158 = por %p156, %p157
      %p159 = scmp.ne.s32.totalorder %s148, %s151
      %p160 = scmp.eq.s32.totalorder %s32, 15
      %p161 = por %p159, %p160
      %p162 = scmp.ne.s32.totalorder %s151, %s152
      %p163 = scmp.eq.s32.totalorder %s32, 0
      %p164 = por %p162, %p163
      %p165 = scmp.ne.s32.totalorder %s151, %s152
      %p166 = scmp.eq.s32.totalorder %s33, 15
      %p167 = por %p165, %p166
      %p169 = scmp.ne.s32.totalorder %s152, %s168
      %p170 = scmp.eq.s32.totalorder %s33, 0
      %p171 = por %p169, %p170
      %s172 = ssub.s32 %s35, %s42
      %p173 = scmp.eq.s32.totalorder %s172, 0
      %s175 = sadd.s32 %s174, 1
      %s176 = scalar_select %p173, %s174, %s175
      %p179 = pneg %p173
      %p180 = scmp.eq.s32.totalorder %s27, 15
      %p181 = por %p179, %p180
      %p182 = scmp.ne.s32.totalorder %s174, %s177
      %p183 = scmp.eq.s32.totalorder %s27, 0
      %p184 = por %p182, %p183
      %p185 = scmp.ne.s32.totalorder %s174, %s177
      %p186 = scmp.eq.s32.totalorder %s32, 15
      %p187 = por %p185, %p186
      %p188 = scmp.ne.s32.totalorder %s177, %s178
      %p189 = scmp.eq.s32.totalorder %s32, 0
      %p190 = por %p188, %p189
      %p191 = scmp.ne.s32.totalorder %s177, %s178
      %p192 = scmp.eq.s32.totalorder %s33, 15
      %p193 = por %p191, %p192
      %p195 = scmp.ne.s32.totalorder %s178, %s194
      %p196 = scmp.eq.s32.totalorder %s33, 0
      %p197 = por %p195, %p196
      %s198 = ssub.s32 %s35, %s42
      %p199 = scmp.eq.s32.totalorder %s198, 0
      %s201 = sadd.s32 %s200, 1
      %s202 = scalar_select %p199, %s200, %s201
      %p205 = pneg %p199
      %p206 = scmp.eq.s32.totalorder %s27, 15
      %p207 = por %p205, %p206
      %p208 = scmp.ne.s32.totalorder %s200, %s203
      %p209 = scmp.eq.s32.totalorder %s27, 0
      %p210 = por %p208, %p209
      %p211 = scmp.ne.s32.totalorder %s200, %s203
      %p212 = scmp.eq.s32.totalorder %s32, 15
      %p213 = por %p211, %p212
      %p214 = scmp.ne.s32.totalorder %s203, %s204
      %p215 = scmp.eq.s32.totalorder %s32, 0
      %p216 = por %p214, %p215
      %p217 = scmp.ne.s32.totalorder %s203, %s204
      %p218 = scmp.eq.s32.totalorder %s33, 15
      %p219 = por %p217, %p218
      %p221 = scmp.ne.s32.totalorder %s204, %s220
      %p222 = scmp.eq.s32.totalorder %s33, 0
      %p223 = por %p221, %p222
      %s224 = ssub.s32 %s35, %s42
      %p225 = scmp.eq.s32.totalorder %s224, 0
      %s227 = sadd.s32 %s226, 1
      %s228 = scalar_select %p225, %s226, %s227
      %p231 = pneg %p225
      %p232 = scmp.eq.s32.totalorder %s27, 15
      %p233 = por %p231, %p232
      %p234 = scmp.ne.s32.totalorder %s226, %s229
      %p235 = scmp.eq.s32.totalorder %s27, 0
      %p236 = por %p234, %p235
      %p237 = scmp.ne.s32.totalorder %s226, %s229
      %p238 = scmp.eq.s32.totalorder %s32, 15
      %p239 = por %p237, %p238
      %p240 = scmp.ne.s32.totalorder %s229, %s230
      %p241 = scmp.eq.s32.totalorder %s32, 0
      %p242 = por %p240, %p241
      %p243 = scmp.ne.s32.totalorder %s229, %s230
      %p244 = scmp.eq.s32.totalorder %s33, 15
      %p245 = por %p243, %p244
      %p247 = scmp.ne.s32.totalorder %s230, %s246
      %p248 = scmp.eq.s32.totalorder %s33, 0
      %p249 = por %p247, %p248
      %s250 = ssub.s32 %s35, %s42
      %p251 = scmp.eq.s32.totalorder %s250, 0
      %s253 = sadd.s32 %s252, 1
      %s254 = scalar_select %p251, %s252, %s253
      %p257 = pneg %p251
      %p258 = scmp.eq.s32.totalorder %s27, 15
      %p259 = por %p257, %p258
      %p260 = scmp.ne.s32.totalorder %s252, %s255
      %p261 = scmp.eq.s32.totalorder %s27, 0
      %p262 = por %p260, %p261
      %p263 = scmp.ne.s32.totalorder %s252, %s255
      %p264 = scmp.eq.s32.totalorder %s32, 15
      %p265 = por %p263, %p264
      %p266 = scmp.ne.s32.totalorder %s255, %s256
      %p267 = scmp.eq.s32.totalorder %s32, 0
      %p268 = por %p266, %p267
      %p269 = scmp.ne.s32.totalorder %s255, %s256
      %p270 = scmp.eq.s32.totalorder %s33, 15
      %p271 = por %p269, %p270
      %p273 = scmp.ne.s32.totalorder %s256, %s272
      %p274 = scmp.eq.s32.totalorder %s33, 0
      %p275 = por %p273, %p274
      %s276 = ssub.s32 %s35, %s42
      %p277 = scmp.eq.s32.totalorder %s276, 0
      %s279 = sadd.s32 %s278, 1
      %s280 = scalar_select %p277, %s278, %s279
      %p283 = pneg %p277
      %p284 = scmp.eq.s32.totalorder %s27, 15
      %p285 = por %p283, %p284
      %p286 = scmp.ne.s32.totalorder %s278, %s281
      %p287 = scmp.eq.s32.totalorder %s27, 0
      %p288 = por %p286, %p287
      %p289 = scmp.ne.s32.totalorder %s278, %s281
      %p290 = scmp.eq.s32.totalorder %s32, 15
      %p291 = por %p289, %p290
      %p292 = scmp.ne.s32.totalorder %s281, %s282
      %p293 = scmp.eq.s32.totalorder %s32, 0
      %p294 = por %p292, %p293
      %p295 = scmp.ne.s32.totalorder %s281, %s282
      %p296 = scmp.eq.s32.totalorder %s33, 15
      %p297 = por %p295, %p296
      %p299 = scmp.ne.s32.totalorder %s282, %s298
      %p300 = scmp.eq.s32.totalorder %s33, 0
      %p301 = por %p299, %p300
      %s302 = ssub.s32 %s35, %s42
      %p303 = scmp.eq.s32.totalorder %s302, 0
      %s305 = sadd.s32 %s304, 1
      %s306 = scalar_select %p303, %s304, %s305
      %p309 = pneg %p303
      %p310 = scmp.eq.s32.totalorder %s27, 15
      %p311 = por %p309, %p310
      %p312 = scmp.ne.s32.totalorder %s304, %s307
      %p313 = scmp.eq.s32.totalorder %s27, 0
      %p314 = por %p312, %p313
      %p315 = scmp.ne.s32.totalorder %s304, %s307
      %p316 = scmp.eq.s32.totalorder %s32, 15
      %p317 = por %p315, %p316
      %p318 = scmp.ne.s32.totalorder %s307, %s308
      %p319 = scmp.eq.s32.totalorder %s32, 0
      %p320 = por %p318, %p319
      %p321 = scmp.ne.s32.totalorder %s307, %s308
      %p322 = scmp.eq.s32.totalorder %s33, 15
      %p323 = por %p321, %p322
      %p325 = scmp.ne.s32.totalorder %s308, %s324
      %p326 = scmp.eq.s32.totalorder %s33, 0
      %p327 = por %p325, %p326
      %s328 = ssub.s32 %s35, %s42
      %p329 = scmp.eq.s32.totalorder %s328, 0
      %s331 = sadd.s32 %s330, 1
      %s332 = scalar_select %p329, %s330, %s331
      %p335 = pneg %p329
      %p336 = scmp.eq.s32.totalorder %s27, 15
      %p337 = por %p335, %p336
      %p338 = scmp.ne.s32.totalorder %s330, %s333
      %p339 = scmp.eq.s32.totalorder %s27, 0
      %p340 = por %p338, %p339
      %p341 = scmp.ne.s32.totalorder %s330, %s333
      %p342 = scmp.eq.s32.totalorder %s32, 15
      %p343 = por %p341, %p342
      %p344 = scmp.ne.s32.totalorder %s333, %s334
      %p345 = scmp.eq.s32.totalorder %s32, 0
      %p346 = por %p344, %p345
      %p347 = scmp.ne.s32.totalorder %s333, %s334
      %p348 = scmp.eq.s32.totalorder %s33, 15
      %p349 = por %p347, %p348
      %p351 = scmp.ne.s32.totalorder %s334, %s350
      %p352 = scmp.eq.s32.totalorder %s33, 0
      %p353 = por %p351, %p352
      %s354 = ssub.s32 %s35, %s42
      %p355 = scmp.eq.s32.totalorder %s354, 0
      %s357 = sadd.s32 %s356, 1
      %s358 = scalar_select %p355, %s356, %s357
      %p361 = pneg %p355
      %p362 = scmp.eq.s32.totalorder %s27, 15
      %p363 = por %p361, %p362
      %p364 = scmp.ne.s32.totalorder %s356, %s359
      %p365 = scmp.eq.s32.totalorder %s27, 0
      %p366 = por %p364, %p365
      %p367 = scmp.ne.s32.totalorder %s356, %s359
      %p368 = scmp.eq.s32.totalorder %s32, 15
      %p369 = por %p367, %p368
      %p370 = scmp.ne.s32.totalorder %s359, %s360
      %p371 = scmp.eq.s32.totalorder %s32, 0
      %p372 = por %p370, %p371
      %p373 = scmp.ne.s32.totalorder %s359, %s360
      %p374 = scmp.eq.s32.totalorder %s33, 15
      %p375 = por %p373, %p374
      %p377 = scmp.ne.s32.totalorder %s360, %s376
      %p378 = scmp.eq.s32.totalorder %s33, 0
      %p379 = por %p377, %p378
      %s381 = sadd.s32 %s380, 1
      %p384 = scmp.eq.s32.totalorder %s27, 15
      %p385 = scmp.ne.s32.totalorder %s380, %s382
      %p386 = scmp.eq.s32.totalorder %s27, 0
      %p387 = por %p385, %p386
      %p388 = scmp.ne.s32.totalorder %s380, %s382
      %p389 = scmp.eq.s32.totalorder %s32, 15
      %p390 = por %p388, %p389
      %p391 = scmp.ne.s32.totalorder %s382, %s383
      %p392 = scmp.eq.s32.totalorder %s32, 0
      %p393 = por %p391, %p392
      %p394 = scmp.ne.s32.totalorder %s382, %s383
      %p395 = scmp.eq.s32.totalorder %s33, 15
      %p396 = por %p394, %p395
      %p398 = scmp.ne.s32.totalorder %s383, %s397
      %p399 = scmp.eq.s32.totalorder %s33, 0
      %p400 = por %p398, %p399
      %s402 = sadd.s32 %s401, 1
      %p405 = scmp.eq.s32.totalorder %s27, 15
      %p406 = scmp.ne.s32.totalorder %s401, %s403
      %p407 = scmp.eq.s32.totalorder %s27, 0
      %p408 = por %p406, %p407
      %p409 = scmp.ne.s32.totalorder %s401, %s403
      %p410 = scmp.eq.s32.totalorder %s32, 15
      %p411 = por %p409, %p410
      %p412 = scmp.ne.s32.totalorder %s403, %s404
      %p413 = scmp.eq.s32.totalorder %s32, 0
      %p414 = por %p412, %p413
      %p415 = scmp.ne.s32.totalorder %s403, %s404
      %p416 = scmp.eq.s32.totalorder %s33, 15
      %p417 = por %p415, %p416
      %p419 = scmp.ne.s32.totalorder %s404, %s418
      %p420 = scmp.eq.s32.totalorder %s33, 0
      %p421 = por %p419, %p420
      %s422 = ssub.s32 %s34, %s46
      %p423 = scmp.eq.s32.totalorder %s422, 0
      %s425 = sadd.s32 %s424, 1
      %s426 = scalar_select %p423, %s424, %s425
      %p429 = pneg %p423
      %p430 = scmp.eq.s32.totalorder %s27, 15
      %p431 = por %p429, %p430
      %p432 = scmp.ne.s32.totalorder %s424, %s427
      %p433 = scmp.eq.s32.totalorder %s27, 0
      %p434 = por %p432, %p433
      %p435 = scmp.ne.s32.totalorder %s424, %s427
      %p436 = scmp.eq.s32.totalorder %s32, 15
      %p437 = por %p435, %p436
      %p438 = scmp.ne.s32.totalorder %s427, %s428
      %p439 = scmp.eq.s32.totalorder %s32, 0
      %p440 = por %p438, %p439
      %p441 = scmp.ne.s32.totalorder %s427, %s428
      %p442 = scmp.eq.s32.totalorder %s33, 15
      %p443 = por %p441, %p442
      %p445 = scmp.ne.s32.totalorder %s428, %s444
      %p446 = scmp.eq.s32.totalorder %s33, 0
      %p447 = por %p445, %p446
      %p448 = scmp.le.s32.totalorder 1, %s27
      %p449 = scmp.lt.s32.totalorder %s27, 17
      %p450 = pnand %p448, %p449
      %p451 = pneg %p450
      // Predicated region
      $region9: #{gen_trf_forward.1} parent=5 // pred_check
        _
      $region10: #{gen_trf_forward.1} parent=5 // pred_check_branch
        %453 = sbr.rel (%p450) target = $region12
      $region11: #{gen_trf_forward.1} parent=5 // pred_region
        %s454 = ssub.s32 %s27, 1
        // Predicated region
        $region13: #{gen_trf_forward.1} parent=11 // pred_check
          %p455 = pneg %p60
        $region14: #{gen_trf_forward.1} parent=11 // pred_check_branch
          %457 = sbr.rel (%p455) target = $region16
        $region15: #{gen_trf_forward.1} parent=11 // pred_region
          _
        $region16: #{gen_trf_forward.1} parent=11 // pred_fallthru
          _
        // Predicated region
        $region17: #{gen_trf_forward.1} parent=11 // pred_check
          %p458 = pneg %p393
        $region18: #{gen_trf_forward.1} parent=11 // pred_check_branch
          %460 = sbr.rel (%p458) target = $region20
        $region19: #{gen_trf_forward.1} parent=11 // pred_region
          _
        $region20: #{gen_trf_forward.1} parent=11 // pred_fallthru
          _
        // Predicated region
        $region21: #{gen_trf_forward.1} parent=11 // pred_check
          %p461 = pneg %p414
        $region22: #{gen_trf_forward.1} parent=11 // pred_check_branch
          %463 = sbr.rel (%p461) target = $region24
        $region23: #{gen_trf_forward.1} parent=11 // pred_region
          _
        $region24: #{gen_trf_forward.1} parent=11 // pred_fallthru
          _
      $region12: #{gen_trf_forward.1} parent=5 // pred_fallthru
        _
      %p464 = scmp.lt.s32.totalorder %s27, 16
      // Predicated region
      $region25: #{gen_trf_forward.1} parent=5 // pred_check
        %p465 = pneg %p464
      $region26: #{gen_trf_forward.1} parent=5 // pred_check_branch
        %467 = sbr.rel (%p465) target = $region28
      $region27: #{gen_trf_forward.1} parent=5 // pred_region
        // Predicated region
        $region29: #{gen_trf_forward.1} parent=27 // pred_check
          %p468 = pneg %p80
        $region30: #{gen_trf_forward.1} parent=27 // pred_check_branch
          %470 = sbr.rel (%p468) target = $region32
        $region31: #{gen_trf_forward.1} parent=27 // pred_region
          %p471 = scmp.lt.s32.totalorder %s34, 1
          %s472 = scalar_select %p471, %s34, 1
          %s473 = smul.addr %s472, 8
          %s474 = scalar_lea.vmem %s1, %s473
        $region32: #{gen_trf_forward.1} parent=27 // pred_fallthru
          _
        // Predicated region
        $region33: #{gen_trf_forward.1} parent=27 // pred_check
          %p475 = pneg %p106
        $region34: #{gen_trf_forward.1} parent=27 // pred_check_branch
          %477 = sbr.rel (%p475) target = $region36
        $region35: #{gen_trf_forward.1} parent=27 // pred_region
          %p478 = scmp.lt.s32.totalorder %s35, 7
          %s479 = scalar_select %p478, %s35, 7
          %s480 = smul.addr %s479, 16
          %s481 = smul.addr %s480, 4
          %s482 = scalar_lea.vmem %s2, %s481
        $region36: #{gen_trf_forward.1} parent=27 // pred_fallthru
          _
        // Predicated region
        $region37: #{gen_trf_forward.1} parent=27 // pred_check
          %p483 = pneg %p132
        $region38: #{gen_trf_forward.1} parent=27 // pred_check_branch
          %485 = sbr.rel (%p483) target = $region40
        $region39: #{gen_trf_forward.1} parent=27 // pred_region
          %s486 = sand.u32 %s122, 1
          %s487 = scalar_lea.sflag [#allocation4], %s486
          %s488 = sand.u32 %s122, 1
          %s489 = smul.addr %s488, 64
          %s490 = scalar_lea.vmem [#allocation3], %s489
          %492 = vsyncadd %s487, 0
          %s493 = smul.addr %s35, 16
          %s494 = smul.addr %s493, 4
          %s495 = scalar_lea.hbm %s3, %s494
          %s496 = sshll.u32 %s495, 4
          %s497 = int_to_ptr.hbm [resolvable:$true] %s496
          %s498 = sshll.u32 %s490, 4
          %s499 = int_to_ptr.vmem [resolvable:$true] %s498
          %504 = dma.hbm_to_vmem [thread:$0]  %s497, 1024, %s499, %s487, 64, 64, 4
        $region40: #{gen_trf_forward.1} parent=27 // pred_fallthru
          _
        // Predicated region
        $region41: #{gen_trf_forward.1} parent=27 // pred_check
          %p505 = pneg %p158
        $region42: #{gen_trf_forward.1} parent=27 // pred_check_branch
          %507 = sbr.rel (%p505) target = $region44
        $region43: #{gen_trf_forward.1} parent=27 // pred_region
          %p508 = scmp.lt.s32.totalorder %s35, 7
          %s509 = scalar_select %p508, %s35, 7
          %s510 = scalar_lea.vmem %s4, %s509
        $region44: #{gen_trf_forward.1} parent=27 // pred_fallthru
          _
        // Predicated region
        $region45: #{gen_trf_forward.1} parent=27 // pred_check
          %p511 = pneg %p184
        $region46: #{gen_trf_forward.1} parent=27 // pred_check_branch
          %513 = sbr.rel (%p511) target = $region48
        $region47: #{gen_trf_forward.1} parent=27 // pred_region
          %p514 = scmp.lt.s32.totalorder %s35, 7
          %s515 = scalar_select %p514, %s35, 7
          %s516 = scalar_lea.vmem %s5, %s515
        $region48: #{gen_trf_forward.1} parent=27 // pred_fallthru
          _
        // Predicated region
        $region49: #{gen_trf_forward.1} parent=27 // pred_check
          %p517 = pneg %p210
        $region50: #{gen_trf_forward.1} parent=27 // pred_check_branch
          %519 = sbr.rel (%p517) target = $region52
        $region51: #{gen_trf_forward.1} parent=27 // pred_region
          %p520 = scmp.lt.s32.totalorder %s35, 7
          %s521 = scalar_select %p520, %s35, 7
          %s522 = scalar_lea.vmem %s6, %s521
        $region52: #{gen_trf_forward.1} parent=27 // pred_fallthru
          _
        // Predicated region
        $region53: #{gen_trf_forward.1} parent=27 // pred_check
          %p523 = pneg %p236
        $region54: #{gen_trf_forward.1} parent=27 // pred_check_branch
          %525 = sbr.rel (%p523) target = $region56
        $region55: #{gen_trf_forward.1} parent=27 // pred_region
          %p526 = scmp.lt.s32.totalorder %s35, 7
          %s527 = scalar_select %p526, %s35, 7
          %s528 = smul.addr %s527, 4
          %s529 = smul.addr %s528, 4
          %s530 = scalar_lea.vmem %s7, %s529
        $region56: #{gen_trf_forward.1} parent=27 // pred_fallthru
          _
        // Predicated region
        $region57: #{gen_trf_forward.1} parent=27 // pred_check
          %p531 = pneg %p262
        $region58: #{gen_trf_forward.1} parent=27 // pred_check_branch
          %533 = sbr.rel (%p531) target = $region60
        $region59: #{gen_trf_forward.1} parent=27 // pred_region
          %p534 = scmp.lt.s32.totalorder %s35, 7
          %s535 = scalar_select %p534, %s35, 7
          %s536 = scalar_lea.vmem %s8, %s535
        $region60: #{gen_trf_forward.1} parent=27 // pred_fallthru
          _
        // Predicated region
        $region61: #{gen_trf_forward.1} parent=27 // pred_check
          %p537 = pneg %p288
        $region62: #{gen_trf_forward.1} parent=27 // pred_check_branch
          %539 = sbr.rel (%p537) target = $region64
        $region63: #{gen_trf_forward.1} parent=27 // pred_region
          %p540 = scmp.lt.s32.totalorder %s35, 7
          %s541 = scalar_select %p540, %s35, 7
          %s542 = smul.addr %s541, 16
          %s543 = smul.addr %s542, 4
          %s544 = scalar_lea.vmem %s9, %s543
        $region64: #{gen_trf_forward.1} parent=27 // pred_fallthru
          _
        // Predicated region
        $region65: #{gen_trf_forward.1} parent=27 // pred_check
          %p545 = pneg %p314
        $region66: #{gen_trf_forward.1} parent=27 // pred_check_branch
          %547 = sbr.rel (%p545) target = $region68
        $region67: #{gen_trf_forward.1} parent=27 // pred_region
          %p548 = scmp.lt.s32.totalorder %s35, 7
          %s549 = scalar_select %p548, %s35, 7
          %s550 = scalar_lea.vmem %s10, %s549
        $region68: #{gen_trf_forward.1} parent=27 // pred_fallthru
          _
        // Predicated region
        $region69: #{gen_trf_forward.1} parent=27 // pred_check
          %p551 = pneg %p340
        $region70: #{gen_trf_forward.1} parent=27 // pred_check_branch
          %553 = sbr.rel (%p551) target = $region72
        $region71: #{gen_trf_forward.1} parent=27 // pred_region
          %p554 = scmp.lt.s32.totalorder %s35, 7
          %s555 = scalar_select %p554, %s35, 7
          %s556 = scalar_lea.vmem %s11, %s555
        $region72: #{gen_trf_forward.1} parent=27 // pred_fallthru
          _
        // Predicated region
        $region73: #{gen_trf_forward.1} parent=27 // pred_check
          %p557 = pneg %p366
        $region74: #{gen_trf_forward.1} parent=27 // pred_check_branch
          %559 = sbr.rel (%p557) target = $region76
        $region75: #{gen_trf_forward.1} parent=27 // pred_region
          %p560 = scmp.lt.s32.totalorder %s35, 7
          %s561 = scalar_select %p560, %s35, 7
          %s562 = scalar_lea.vmem %s12, %s561
        $region76: #{gen_trf_forward.1} parent=27 // pred_fallthru
          _
      $region28: #{gen_trf_forward.1} parent=5 // pred_fallthru
        _
      %p563 = scmp.le.s32.totalorder 1, %s27
      %p564 = scmp.lt.s32.totalorder %s27, 17
      %p565 = pnand %p563, %p564
      %p566 = pneg %p565
      // Predicated region
      $region77: #{gen_trf_forward.1} parent=5 // pred_check
        _
      $region78: #{gen_trf_forward.1} parent=5 // pred_check_branch
        %568 = sbr.rel (%p565) target = $region80
      $region79: #{gen_trf_forward.1} parent=5 // pred_region
        %s569 = ssub.s32 %s27, 1
        %s570 = sand.u32 %s125, 1
        %s571 = scalar_lea.sflag [#allocation4], %s570
        %s572 = sand.u32 %s125, 1
        %s573 = smul.addr %s572, 64
        %s574 = scalar_lea.vmem [#allocation3], %s573
        // Predicated region
        $region81: #{gen_trf_forward.1} parent=79 // pred_check
          %p575 = pneg %p138
        $region82: #{gen_trf_forward.1} parent=79 // pred_check_branch
          %577 = sbr.rel (%p575) target = $region84
        $region83: #{gen_trf_forward.1} parent=79 // pred_region
          %579 = dma.done %s571, 1024
        $region84: #{gen_trf_forward.1} parent=79 // pred_fallthru
          _
        %p580 = pneg %p60
        %p581 = pneg %p57
        %p582 = scmp.lt.s32.totalorder %s36, 1
        %s583 = scalar_select %p582, %s36, 1
        %s584 = smul.addr %s583, 8
        %s585 = scalar_lea.vmem %s1, %s584
        %p586 = pneg %p86
        %p587 = pneg %p83
        %p588 = scmp.lt.s32.totalorder %s37, 7
        %s589 = scalar_select %p588, %s37, 7
        %s590 = smul.addr %s589, 16
        %s591 = smul.addr %s590, 4
        %s592 = scalar_lea.vmem %s2, %s591
        %p593 = pneg %p112
        %p594 = pneg %p109
        %s595 = sand.u32 %s125, 1
        %s596 = scalar_lea.sflag [#allocation4], %s595
        %s597 = sand.u32 %s125, 1
        %s598 = smul.addr %s597, 64
        %s599 = scalar_lea.vmem [#allocation3], %s598
        %p600 = pneg %p138
        %p601 = pneg %p135
        %p602 = scmp.lt.s32.totalorder %s37, 7
        %s603 = scalar_select %p602, %s37, 7
        %s604 = scalar_lea.vmem %s4, %s603
        %p605 = pneg %p164
        %p606 = pneg %p161
        %p607 = scmp.lt.s32.totalorder %s37, 7
        %s608 = scalar_select %p607, %s37, 7
        %s609 = scalar_lea.vmem %s5, %s608
        %p610 = pneg %p190
        %p611 = pneg %p187
        %p612 = scmp.lt.s32.totalorder %s37, 7
        %s613 = scalar_select %p612, %s37, 7
        %s614 = scalar_lea.vmem %s6, %s613
        %p615 = pneg %p216
        %p616 = pneg %p213
        %p617 = scmp.lt.s32.totalorder %s37, 7
        %s618 = scalar_select %p617, %s37, 7
        %s619 = smul.addr %s618, 4
        %s620 = smul.addr %s619, 4
        %s621 = scalar_lea.vmem %s7, %s620
        %p622 = pneg %p242
        %p623 = pneg %p239
        %p624 = scmp.lt.s32.totalorder %s37, 7
        %s625 = scalar_select %p624, %s37, 7
        %s626 = scalar_lea.vmem %s8, %s625
        %p627 = pneg %p268
        %p628 = pneg %p265
        %p629 = scmp.lt.s32.totalorder %s37, 7
        %s630 = scalar_select %p629, %s37, 7
        %s631 = smul.addr %s630, 16
        %s632 = smul.addr %s631, 4
        %s633 = scalar_lea.vmem %s9, %s632
        %p634 = pneg %p294
        %p635 = pneg %p291
        %p636 = scmp.lt.s32.totalorder %s37, 7
        %s637 = scalar_select %p636, %s37, 7
        %s638 = scalar_lea.vmem %s10, %s637
        %p639 = pneg %p320
        %p640 = pneg %p317
        %p641 = scmp.lt.s32.totalorder %s37, 7
        %s642 = scalar_select %p641, %s37, 7
        %s643 = scalar_lea.vmem %s11, %s642
        %p644 = pneg %p346
        %p645 = pneg %p343
        %p646 = scmp.lt.s32.totalorder %s37, 7
        %s647 = scalar_select %p646, %s37, 7
        %s648 = scalar_lea.vmem %s12, %s647
        %p649 = pneg %p372
        %p650 = pneg %p369
        %p651 = pneg %p393
        %p652 = pneg %p390
        %p653 = pneg %p414
        %p654 = pneg %p411
        %p655 = pneg %p440
        %p656 = pneg %p437
        %s657 = sand.u32 %s427, 1
        %s658 = scalar_lea.sflag [#allocation5], %s657
        %s659 = sand.u32 %s427, 1
        %s660 = smul.addr %s659, 8
        %s661 = scalar_lea.vmem [#allocation6], %s660
        %p662 = scmp.lt.s32.totalorder %s36, 1
        %s663 = scalar_select %p662, %s36, 1
        %s664 = smul.addr %s663, 8
        %s665 = scalar_lea.vmem %s1, %s664
        %p666 = scmp.lt.s32.totalorder %s37, 7
        %s667 = scalar_select %p666, %s37, 7
        %s668 = smul.addr %s667, 16
        %s669 = smul.addr %s668, 4
        %s670 = scalar_lea.vmem %s2, %s669
        %p671 = scmp.lt.s32.totalorder %s37, 7
        %s672 = scalar_select %p671, %s37, 7
        %s673 = scalar_lea.vmem %s4, %s672
        %p674 = scmp.lt.s32.totalorder %s37, 7
        %s675 = scalar_select %p674, %s37, 7
        %s676 = scalar_lea.vmem %s5, %s675
        %p677 = scmp.lt.s32.totalorder %s37, 7
        %s678 = scalar_select %p677, %s37, 7
        %s679 = scalar_lea.vmem %s6, %s678
        %p680 = scmp.lt.s32.totalorder %s37, 7
        %s681 = scalar_select %p680, %s37, 7
        %s682 = smul.addr %s681, 4
        %s683 = smul.addr %s682, 4
        %s684 = scalar_lea.vmem %s7, %s683
        %p685 = scmp.lt.s32.totalorder %s37, 7
        %s686 = scalar_select %p685, %s37, 7
        %s687 = scalar_lea.vmem %s8, %s686
        %p688 = scmp.lt.s32.totalorder %s37, 7
        %s689 = scalar_select %p688, %s37, 7
        %s690 = smul.addr %s689, 16
        %s691 = smul.addr %s690, 4
        %s692 = scalar_lea.vmem %s9, %s691
        %p693 = scmp.lt.s32.totalorder %s37, 7
        %s694 = scalar_select %p693, %s37, 7
        %s695 = scalar_lea.vmem %s10, %s694
        %p696 = scmp.lt.s32.totalorder %s37, 7
        %s697 = scalar_select %p696, %s37, 7
        %s698 = scalar_lea.vmem %s11, %s697
        %p699 = scmp.lt.s32.totalorder %s37, 7
        %s700 = scalar_select %p699, %s37, 7
        %s701 = scalar_lea.vmem %s12, %s700
        %p703 = scmp.eq.s32.totalorder %s37, 0
        // Predicated region
        $region85: #{gen_trf_forward.1} parent=79 // pred_check
          %p704 = pneg %p703
        $region86: #{gen_trf_forward.1} parent=79 // pred_check_branch
          %706 = sbr.rel (%p704) target = $region88
        $region87: #{gen_trf_forward.1} parent=79 // pred_region
          %v707 = vld [vmem:[%s665] sm:$0xff]
          %vm708 = vcmask 261120
          %709 = vst.msk [vmem:[#allocation2] sm:$0xff] %vm708, %v707
        $region88: #{gen_trf_forward.1} parent=79 // pred_fallthru
          _
        %v710 = vld [vmem:[#allocation2] sm:$0xff]
        %v711 = vpack.c.bf16 %v710, %v710
        %v712 = vld [vmem:[%s670] sm:$0xf]
        %v713 = vld [vmem:[%s670 + $0x4] sm:$0xf]
        %v714 = vld [vmem:[%s670 + $0x8] sm:$0xf]
        %v715 = vld [vmem:[%s670 + $0xc] sm:$0xf]
        %v716 = vld [vmem:[%s670 + $0x10] sm:$0xf]
        %v717 = vld [vmem:[%s670 + $0x14] sm:$0xf]
        %v718 = vld [vmem:[%s670 + $0x18] sm:$0xf]
        %v719 = vld [vmem:[%s670 + $0x1c] sm:$0xf]
        %v720 = vld [vmem:[%s670 + $0x20] sm:$0xf]
        %v721 = vld [vmem:[%s670 + $0x24] sm:$0xf]
        %v722 = vld [vmem:[%s670 + $0x28] sm:$0xf]
        %v723 = vld [vmem:[%s670 + $0x2c] sm:$0xf]
        %v724 = vld [vmem:[%s670 + $0x30] sm:$0xf]
        %v725 = vld [vmem:[%s670 + $0x34] sm:$0xf]
        %v726 = vld [vmem:[%s670 + $0x38] sm:$0xf]
        %v727 = vld [vmem:[%s670 + $0x3c] sm:$0xf]
        %v732 = vunpack.c.l.b16 %v712
        %v733 = vunpack.c.l.b16 %v713
        %v734 = vunpack.c.l.b16 %v714
        %v735 = vunpack.c.l.b16 %v715
        %v736 = vpack.c.b16 %v733, %v732
        %v737 = vpack.c.b16 %v735, %v734
        %vm740 = vcmask 261120
        %v742 = vsel %vm740, %v711, 0
        %744 = vmatpush.bf16.msra.mxu0 0
        %745 = vmatpush.bf16.msra.mxu0 0
        %746 = vmatpush.bf16.msra.mxu0 0
        %747 = vmatpush.bf16.msra.mxu0 0
        %748 = vmatpush.bf16.msra.mxu0 0
        %749 = vmatpush.bf16.msra.mxu0 0
        %750 = vmatpush.bf16.msra.mxu0 %v737
        %751 = vmatpush.bf16.msra.mxu0 %v736
        %752 = vmatmul.bf16.gmra.mxu0 %v742
        %v753 = vpop.f32.mrf.mxu0
        %v754 = vadd.f32 0.0, %v753
        %v755 = vpop.f32.mrf.mxu0
        %756 = vdwg.mxu0
        %v761 = vunpack.c.l.b16 %v716
        %v762 = vunpack.c.l.b16 %v717
        %v763 = vunpack.c.l.b16 %v718
        %v764 = vunpack.c.l.b16 %v719
        %v765 = vpack.c.b16 %v762, %v761
        %v766 = vpack.c.b16 %v764, %v763
        %769 = vmatpush.bf16.msra.mxu0 0
        %770 = vmatpush.bf16.msra.mxu0 0
        %771 = vmatpush.bf16.msra.mxu0 0
        %772 = vmatpush.bf16.msra.mxu0 0
        %773 = vmatpush.bf16.msra.mxu0 0
        %774 = vmatpush.bf16.msra.mxu0 0
        %775 = vmatpush.bf16.msra.mxu0 %v766
        %776 = vmatpush.bf16.msra.mxu0 %v765
        %777 = vmatmul.bf16.gmra.mxu0 %v742
        %v778 = vpop.f32.mrf.mxu0
        %v779 = vadd.f32 0.0, %v778
        %v780 = vpop.f32.mrf.mxu0
        %781 = vdwg.mxu0
        %v786 = vunpack.c.l.b16 %v720
        %v787 = vunpack.c.l.b16 %v721
        %v788 = vunpack.c.l.b16 %v722
        %v789 = vunpack.c.l.b16 %v723
        %v790 = vpack.c.b16 %v787, %v786
        %v791 = vpack.c.b16 %v789, %v788
        %794 = vmatpush.bf16.msra.mxu0 0
        %795 = vmatpush.bf16.msra.mxu0 0
        %796 = vmatpush.bf16.msra.mxu0 0
        %797 = vmatpush.bf16.msra.mxu0 0
        %798 = vmatpush.bf16.msra.mxu0 0
        %799 = vmatpush.bf16.msra.mxu0 0
        %800 = vmatpush.bf16.msra.mxu0 %v791
        %801 = vmatpush.bf16.msra.mxu0 %v790
        %802 = vmatmul.bf16.gmra.mxu0 %v742
        %v803 = vpop.f32.mrf.mxu0
        %v804 = vadd.f32 0.0, %v803
        %v805 = vpop.f32.mrf.mxu0
        %806 = vdwg.mxu0
        %v811 = vunpack.c.l.b16 %v724
        %v812 = vunpack.c.l.b16 %v725
        %v813 = vunpack.c.l.b16 %v726
        %v814 = vunpack.c.l.b16 %v727
        %v815 = vpack.c.b16 %v812, %v811
        %v816 = vpack.c.b16 %v814, %v813
        %819 = vmatpush.bf16.msra.mxu0 0
        %820 = vmatpush.bf16.msra.mxu0 0
        %821 = vmatpush.bf16.msra.mxu0 0
        %822 = vmatpush.bf16.msra.mxu0 0
        %823 = vmatpush.bf16.msra.mxu0 0
        %824 = vmatpush.bf16.msra.mxu0 0
        %825 = vmatpush.bf16.msra.mxu0 %v816
        %826 = vmatpush.bf16.msra.mxu0 %v815
        %827 = vmatmul.bf16.gmra.mxu0 %v742
        %v828 = vpop.f32.mrf.mxu0
        %v829 = vadd.f32 0.0, %v828
        %v830 = vpop.f32.mrf.mxu0
        %831 = vdwg.mxu0
        %v832 = vld [vmem:[%s0] sm:$0xff]
        %834 = vrot.lane.b32.xlu0 %v754, 96
        %v835 = vpop.permute.xlu0 %834
        %v836 = vsel %vm740, %v754, 0
        %v838 = vsel %vm740, %v835, 0
        %840 = vmatpush.xpose.msra.mxu0 0.0
        %841 = vmatpush.xpose.msra.mxu0 0.0
        %842 = vmatpush.xpose.msra.mxu0 0.0
        %843 = vmatpush.xpose.msra.mxu0 0.0
        %844 = vmatpush.xpose.msra.mxu0 0.0
        %845 = vmatpush.xpose.msra.mxu0 0.0
        %846 = vmatpush.xpose.msra.mxu0 0.0
        %847 = vmatpush.xpose.msra.mxu0 0.0
        %848 = vmatpush.xpose.msra.mxu0 0.0
        %849 = vmatpush.xpose.msra.mxu0 0.0
        %850 = vmatpush.xpose.msra.mxu0 0.0
        %851 = vmatpush.xpose.msra.mxu0 0.0
        %852 = vmatpush.xpose.msra.mxu0 0.0
        %853 = vmatpush.xpose.msra.mxu0 0.0
        %854 = vmatpush.xpose.msra.mxu0 0.0
        %855 = vmatpush.xpose.msra.mxu0 %v838
        %856 = vmatmul.f32.gmra.mxu0 %v836
        %v857 = vpop.f32.mrf.mxu0
        %v858 = vadd.f32 %v832, %v857
        %859 = vdwg.mxu0
        %861 = vrot.lane.b32.xlu0 %v779, 96
        %v862 = vpop.permute.xlu0 %861
        %v863 = vsel %vm740, %v779, 0
        %v865 = vsel %vm740, %v862, 0
        %867 = vmatpush.xpose.msra.mxu0 0.0
        %868 = vmatpush.xpose.msra.mxu0 0.0
        %869 = vmatpush.xpose.msra.mxu0 0.0
        %870 = vmatpush.xpose.msra.mxu0 0.0
        %871 = vmatpush.xpose.msra.mxu0 0.0
        %872 = vmatpush.xpose.msra.mxu0 0.0
        %873 = vmatpush.xpose.msra.mxu0 0.0
        %874 = vmatpush.xpose.msra.mxu0 0.0
        %875 = vmatpush.xpose.msra.mxu0 0.0
        %876 = vmatpush.xpose.msra.mxu0 0.0
        %877 = vmatpush.xpose.msra.mxu0 0.0
        %878 = vmatpush.xpose.msra.mxu0 0.0
        %879 = vmatpush.xpose.msra.mxu0 0.0
        %880 = vmatpush.xpose.msra.mxu0 0.0
        %881 = vmatpush.xpose.msra.mxu0 0.0
        %882 = vmatpush.xpose.msra.mxu0 %v865
        %883 = vmatmul.f32.gmra.mxu0 %v863
        %v884 = vpop.f32.mrf.mxu0
        %v885 = vadd.f32 %v832, %v884
        %886 = vdwg.mxu0
        %888 = vrot.lane.b32.xlu0 %v804, 96
        %v889 = vpop.permute.xlu0 %888
        %v890 = vsel %vm740, %v804, 0
        %v892 = vsel %vm740, %v889, 0
        %894 = vmatpush.xpose.msra.mxu0 0.0
        %895 = vmatpush.xpose.msra.mxu0 0.0
        %896 = vmatpush.xpose.msra.mxu0 0.0
        %897 = vmatpush.xpose.msra.mxu0 0.0
        %898 = vmatpush.xpose.msra.mxu0 0.0
        %899 = vmatpush.xpose.msra.mxu0 0.0
        %900 = vmatpush.xpose.msra.mxu0 0.0
        %901 = vmatpush.xpose.msra.mxu0 0.0
        %902 = vmatpush.xpose.msra.mxu0 0.0
        %903 = vmatpush.xpose.msra.mxu0 0.0
        %904 = vmatpush.xpose.msra.mxu0 0.0
        %905 = vmatpush.xpose.msra.mxu0 0.0
        %906 = vmatpush.xpose.msra.mxu0 0.0
        %907 = vmatpush.xpose.msra.mxu0 0.0
        %908 = vmatpush.xpose.msra.mxu0 0.0
        %909 = vmatpush.xpose.msra.mxu0 %v892
        %910 = vmatmul.f32.gmra.mxu0 %v890
        %v911 = vpop.f32.mrf.mxu0
        %v912 = vadd.f32 %v832, %v911
        %913 = vdwg.mxu0
        %915 = vrot.lane.b32.xlu0 %v829, 96
        %v916 = vpop.permute.xlu0 %915
        %v917 = vsel %vm740, %v829, 0
        %v919 = vsel %vm740, %v916, 0
        %921 = vmatpush.xpose.msra.mxu0 0.0
        %922 = vmatpush.xpose.msra.mxu0 0.0
        %923 = vmatpush.xpose.msra.mxu0 0.0
        %924 = vmatpush.xpose.msra.mxu0 0.0
        %925 = vmatpush.xpose.msra.mxu0 0.0
        %926 = vmatpush.xpose.msra.mxu0 0.0
        %927 = vmatpush.xpose.msra.mxu0 0.0
        %928 = vmatpush.xpose.msra.mxu0 0.0
        %929 = vmatpush.xpose.msra.mxu0 0.0
        %930 = vmatpush.xpose.msra.mxu0 0.0
        %931 = vmatpush.xpose.msra.mxu0 0.0
        %932 = vmatpush.xpose.msra.mxu0 0.0
        %933 = vmatpush.xpose.msra.mxu0 0.0
        %934 = vmatpush.xpose.msra.mxu0 0.0
        %935 = vmatpush.xpose.msra.mxu0 0.0
        %936 = vmatpush.xpose.msra.mxu0 %v919
        %937 = vmatmul.f32.gmra.mxu0 %v917
        %v938 = vpop.f32.mrf.mxu0
        %v939 = vadd.f32 %v832, %v938
        %940 = vdwg.mxu0
        %vm941 = vcmask 64512
        %v942 = vsel %vm941, %v858, -inf
        %943 = vmax.xlane.f32.xlu0 %v942
        %v944 = vpop.xlane.xlu0 %943
        %v945 = vsel %vm941, %v885, -inf
        %946 = vmax.xlane.f32.xlu0 %v945
        %v947 = vpop.xlane.xlu0 %946
        %v948 = vsel %vm941, %v912, -inf
        %949 = vmax.xlane.f32.xlu0 %v948
        %v950 = vpop.xlane.xlu0 %949
        %v951 = vsel %vm941, %v939, -inf
        %952 = vmax.xlane.f32.xlu0 %v951
        %v953 = vpop.xlane.xlu0 %952
        %v954 = vsub.f32 %v858, %v944
        %v955 = vsub.f32 %v885, %v947
        %v956 = vsub.f32 %v912, %v950
        %v957 = vsub.f32 %v939, %v953
        %v958 = vmul.f32 %v954, 1.442695
        %v959 = vpow.pop %v958
        %v960 = vmul.f32 %v955, 1.442695
        %v961 = vpow.pop %v960
        %v962 = vmul.f32 %v956, 1.442695
        %v963 = vpow.pop %v962
        %v964 = vmul.f32 %v957, 1.442695
        %v965 = vpow.pop %v964
        %v966 = vsel %vm941, %v959, 0.0
        %967 = vadd.xlane.f32.xlu0 %v966
        %v968 = vpop.xlane.xlu0 %967
        %v969 = vsel %vm941, %v961, 0.0
        %970 = vadd.xlane.f32.xlu0 %v969
        %v971 = vpop.xlane.xlu0 %970
        %v972 = vsel %vm941, %v963, 0.0
        %973 = vadd.xlane.f32.xlu0 %v972
        %v974 = vpop.xlane.xlu0 %973
        %v975 = vsel %vm941, %v965, 0.0
        %976 = vadd.xlane.f32.xlu0 %v975
        %v977 = vpop.xlane.xlu0 %976
        %v978 = vrcp.pop %v968
        %v979 = vrcp.pop %v971
        %v980 = vrcp.pop %v974
        %v981 = vrcp.pop %v977
        %v982 = vmul.f32 %v959, %v978
        %v983 = vmul.f32 %v961, %v979
        %v984 = vmul.f32 %v963, %v980
        %v985 = vmul.f32 %v965, %v981
        %986 = vrot.lane.b32.xlu0 %v754, 64
        %v987 = vpop.permute.xlu0 %986
        %v990 = vsel %vm941, %v982, 0
        %992 = vmatpush.msra.mxu0 0.0
        %993 = vmatpush.msra.mxu0 0.0
        %994 = vmatpush.msra.mxu0 0.0
        %995 = vmatpush.msra.mxu0 0.0
        %996 = vmatpush.msra.mxu0 0.0
        %997 = vmatpush.msra.mxu0 0.0
        %998 = vmatpush.msra.mxu0 0.0
        %999 = vmatpush.msra.mxu0 0.0
        %1000 = vmatpush.msra.mxu0 0.0
        %1001 = vmatpush.msra.mxu0 0.0
        %1002 = vmatpush.msra.mxu0 0.0
        %1003 = vmatpush.msra.mxu0 0.0
        %1004 = vmatpush.msra.mxu0 0.0
        %1005 = vmatpush.msra.mxu0 0.0
        %1006 = vmatpush.msra.mxu0 0.0
        %1007 = vmatpush.msra.mxu0 %v987
        %1008 = vmatmul.f32.gmra.mxu0 %v990
        %v1009 = vpop.f32.mrf.mxu0
        %v1010 = vadd.f32 0.0, %v1009
        %1011 = vdwg.mxu0
        %1012 = vrot.lane.b32.xlu0 %v779, 64
        %v1013 = vpop.permute.xlu0 %1012
        %v1016 = vsel %vm941, %v983, 0
        %1018 = vmatpush.msra.mxu0 0.0
        %1019 = vmatpush.msra.mxu0 0.0
        %1020 = vmatpush.msra.mxu0 0.0
        %1021 = vmatpush.msra.mxu0 0.0
        %1022 = vmatpush.msra.mxu0 0.0
        %1023 = vmatpush.msra.mxu0 0.0
        %1024 = vmatpush.msra.mxu0 0.0
        %1025 = vmatpush.msra.mxu0 0.0
        %1026 = vmatpush.msra.mxu0 0.0
        %1027 = vmatpush.msra.mxu0 0.0
        %1028 = vmatpush.msra.mxu0 0.0
        %1029 = vmatpush.msra.mxu0 0.0
        %1030 = vmatpush.msra.mxu0 0.0
        %1031 = vmatpush.msra.mxu0 0.0
        %1032 = vmatpush.msra.mxu0 0.0
        %1033 = vmatpush.msra.mxu0 %v1013
        %1034 = vmatmul.f32.gmra.mxu0 %v1016
        %v1035 = vpop.f32.mrf.mxu0
        %v1036 = vadd.f32 0.0, %v1035
        %1037 = vdwg.mxu0
        %1038 = vrot.lane.b32.xlu0 %v804, 64
        %v1039 = vpop.permute.xlu0 %1038
        %v1042 = vsel %vm941, %v984, 0
        %1044 = vmatpush.msra.mxu0 0.0
        %1045 = vmatpush.msra.mxu0 0.0
        %1046 = vmatpush.msra.mxu0 0.0
        %1047 = vmatpush.msra.mxu0 0.0
        %1048 = vmatpush.msra.mxu0 0.0
        %1049 = vmatpush.msra.mxu0 0.0
        %1050 = vmatpush.msra.mxu0 0.0
        %1051 = vmatpush.msra.mxu0 0.0
        %1052 = vmatpush.msra.mxu0 0.0
        %1053 = vmatpush.msra.mxu0 0.0
        %1054 = vmatpush.msra.mxu0 0.0
        %1055 = vmatpush.msra.mxu0 0.0
        %1056 = vmatpush.msra.mxu0 0.0
        %1057 = vmatpush.msra.mxu0 0.0
        %1058 = vmatpush.msra.mxu0 0.0
        %1059 = vmatpush.msra.mxu0 %v1039
        %1060 = vmatmul.f32.gmra.mxu0 %v1042
        %v1061 = vpop.f32.mrf.mxu0
        %v1062 = vadd.f32 0.0, %v1061
        %1063 = vdwg.mxu0
        %1064 = vrot.lane.b32.xlu0 %v829, 64
        %v1065 = vpop.permute.xlu0 %1064
        %v1068 = vsel %vm941, %v985, 0
        %1070 = vmatpush.msra.mxu0 0.0
        %1071 = vmatpush.msra.mxu0 0.0
        %1072 = vmatpush.msra.mxu0 0.0
        %1073 = vmatpush.msra.mxu0 0.0
        %1074 = vmatpush.msra.mxu0 0.0
        %1075 = vmatpush.msra.mxu0 0.0
        %1076 = vmatpush.msra.mxu0 0.0
        %1077 = vmatpush.msra.mxu0 0.0
        %1078 = vmatpush.msra.mxu0 0.0
        %1079 = vmatpush.msra.mxu0 0.0
        %1080 = vmatpush.msra.mxu0 0.0
        %1081 = vmatpush.msra.mxu0 0.0
        %1082 = vmatpush.msra.mxu0 0.0
        %1083 = vmatpush.msra.mxu0 0.0
        %1084 = vmatpush.msra.mxu0 0.0
        %1085 = vmatpush.msra.mxu0 %v1065
        %1086 = vmatmul.f32.gmra.mxu0 %v1068
        %v1087 = vpop.f32.mrf.mxu0
        %v1088 = vadd.f32 0.0, %v1087
        %1089 = vdwg.mxu0
        %v1090 = vpack.c.bf16 %v1010, %v1010
        %v1091 = vpack.c.bf16 %v1036, %v1036
        %v1092 = vpack.c.bf16 %v1062, %v1062
        %v1093 = vpack.c.bf16 %v1088, %v1088
        %v1094 = vld [vmem:[%s574] sm:$0xf]
        %v1095 = vld [vmem:[%s574 + $0x4] sm:$0xf]
        %v1096 = vld [vmem:[%s574 + $0x8] sm:$0xf]
        %v1097 = vld [vmem:[%s574 + $0xc] sm:$0xf]
        %v1098 = vld [vmem:[%s574 + $0x10] sm:$0xf]
        %v1099 = vld [vmem:[%s574 + $0x14] sm:$0xf]
        %v1100 = vld [vmem:[%s574 + $0x18] sm:$0xf]
        %v1101 = vld [vmem:[%s574 + $0x1c] sm:$0xf]
        %v1102 = vld [vmem:[%s574 + $0x20] sm:$0xf]
        %v1103 = vld [vmem:[%s574 + $0x24] sm:$0xf]
        %v1104 = vld [vmem:[%s574 + $0x28] sm:$0xf]
        %v1105 = vld [vmem:[%s574 + $0x2c] sm:$0xf]
        %v1106 = vld [vmem:[%s574 + $0x30] sm:$0xf]
        %v1107 = vld [vmem:[%s574 + $0x34] sm:$0xf]
        %v1108 = vld [vmem:[%s574 + $0x38] sm:$0xf]
        %v1109 = vld [vmem:[%s574 + $0x3c] sm:$0xf]
        %v1114 = vunpack.c.l.b16 %v1094
        %v1115 = vunpack.c.l.b16 %v1095
        %v1116 = vunpack.c.l.b16 %v1096
        %v1117 = vunpack.c.l.b16 %v1097
        %v1118 = vpack.c.b16 %v1115, %v1114
        %v1119 = vpack.c.b16 %v1117, %v1116
        %v1123 = vsel %vm740, %v1090, 0
        %1125 = vmatpush.bf16.msra.mxu0 0
        %1126 = vmatpush.bf16.msra.mxu0 0
        %1127 = vmatpush.bf16.msra.mxu0 0
        %1128 = vmatpush.bf16.msra.mxu0 0
        %1129 = vmatpush.bf16.msra.mxu0 0
        %1130 = vmatpush.bf16.msra.mxu0 0
        %1131 = vmatpush.bf16.msra.mxu0 %v1119
        %1132 = vmatpush.bf16.msra.mxu0 %v1118
        %1133 = vmatmul.bf16.gmra.mxu0 %v1123
        %v1134 = vpop.f32.mrf.mxu0
        %v1135 = vadd.f32 0.0, %v1134
        %v1136 = vpop.f32.mrf.mxu0
        %1137 = vdwg.mxu0
        %v1142 = vunpack.c.l.b16 %v1098
        %v1143 = vunpack.c.l.b16 %v1099
        %v1144 = vunpack.c.l.b16 %v1100
        %v1145 = vunpack.c.l.b16 %v1101
        %v1146 = vpack.c.b16 %v1143, %v1142
        %v1147 = vpack.c.b16 %v1145, %v1144
        %v1151 = vsel %vm740, %v1091, 0
        %1153 = vmatpush.bf16.msra.mxu0 0
        %1154 = vmatpush.bf16.msra.mxu0 0
        %1155 = vmatpush.bf16.msra.mxu0 0
        %1156 = vmatpush.bf16.msra.mxu0 0
        %1157 = vmatpush.bf16.msra.mxu0 0
        %1158 = vmatpush.bf16.msra.mxu0 0
        %1159 = vmatpush.bf16.msra.mxu0 %v1147
        %1160 = vmatpush.bf16.msra.mxu0 %v1146
        %1161 = vmatmul.bf16.gmra.mxu0 %v1151
        %v1162 = vpop.f32.mrf.mxu0
        %v1163 = vadd.f32 0.0, %v1162
        %v1164 = vpop.f32.mrf.mxu0
        %1165 = vdwg.mxu0
        %v1170 = vunpack.c.l.b16 %v1102
        %v1171 = vunpack.c.l.b16 %v1103
        %v1172 = vunpack.c.l.b16 %v1104
        %v1173 = vunpack.c.l.b16 %v1105
        %v1174 = vpack.c.b16 %v1171, %v1170
        %v1175 = vpack.c.b16 %v1173, %v1172
        %v1179 = vsel %vm740, %v1092, 0
        %1181 = vmatpush.bf16.msra.mxu0 0
        %1182 = vmatpush.bf16.msra.mxu0 0
        %1183 = vmatpush.bf16.msra.mxu0 0
        %1184 = vmatpush.bf16.msra.mxu0 0
        %1185 = vmatpush.bf16.msra.mxu0 0
        %1186 = vmatpush.bf16.msra.mxu0 0
        %1187 = vmatpush.bf16.msra.mxu0 %v1175
        %1188 = vmatpush.bf16.msra.mxu0 %v1174
        %1189 = vmatmul.bf16.gmra.mxu0 %v1179
        %v1190 = vpop.f32.mrf.mxu0
        %v1191 = vadd.f32 0.0, %v1190
        %v1192 = vpop.f32.mrf.mxu0
        %1193 = vdwg.mxu0
        %v1198 = vunpack.c.l.b16 %v1106
        %v1199 = vunpack.c.l.b16 %v1107
        %v1200 = vunpack.c.l.b16 %v1108
        %v1201 = vunpack.c.l.b16 %v1109
        %v1202 = vpack.c.b16 %v1199, %v1198
        %v1203 = vpack.c.b16 %v1201, %v1200
        %v1207 = vsel %vm740, %v1093, 0
        %1209 = vmatpush.bf16.msra.mxu0 0
        %1210 = vmatpush.bf16.msra.mxu0 0
        %1211 = vmatpush.bf16.msra.mxu0 0
        %1212 = vmatpush.bf16.msra.mxu0 0
        %1213 = vmatpush.bf16.msra.mxu0 0
        %1214 = vmatpush.bf16.msra.mxu0 0
        %1215 = vmatpush.bf16.msra.mxu0 %v1203
        %1216 = vmatpush.bf16.msra.mxu0 %v1202
        %1217 = vmatmul.bf16.gmra.mxu0 %v1207
        %v1218 = vpop.f32.mrf.mxu0
        %v1219 = vadd.f32 0.0, %v1218
        %v1220 = vpop.f32.mrf.mxu0
        %1221 = vdwg.mxu0
        %v1222 = vsel %vm740, %v1135, 0.0
        %v1223 = vsel %vm740, %v1163, 0.0
        %v1224 = vadd.f32 %v1222, %v1223
        %v1225 = vsel %vm740, %v1191, 0.0
        %v1226 = vadd.f32 %v1224, %v1225
        %v1227 = vsel %vm740, %v1219, 0.0
        %v1228 = vadd.f32 %v1226, %v1227
        %v1229 = vld [vmem:[%s673] sm:$0x1]
        %v1231 = vperm.slane %v1229, 0
        %v1233 = vadd.f32 %v1228, %v1231
        %v1234 = vadd.f32 %v1233, %v710
        %v1235 = vld [vmem:[%s676] sm:$0x1]
        %v1236 = vld [vmem:[%s679] sm:$0x1]
        %v1237 = vsel %vm740, %v1234, 0.0
        %1238 = vadd.xlane.f32.xlu0 %v1237
        %v1239 = vpop.xlane.xlu0 %1238
        %v1240 = vrcp.pop 32.0
        %v1241 = vmul.f32 32.0, %v1240
        %v1242 = vsub.f32 1.0, %v1241
        %v1243 = vmul.f32 %v1240, %v1242
        %v1244 = vadd.f32 %v1240, %v1243
        %vm1245 = vweird.f32 %v1240
        %v1246 = vsel %vm1245, %v1240, %v1244
        %v1247 = vmul.f32 %v1239, %v1246
        %v1248 = vsub.f32 %v1234, %v1247
        %v1249 = vmul.f32 %v1248, %v1248
        %v1250 = vsel %vm740, %v1249, 0.0
        %1251 = vadd.xlane.f32.xlu0 %v1250
        %v1252 = vpop.xlane.xlu0 %1251
        %v1253 = vmul.f32 %v1252, %v1246
        %v1254 = vadd.f32 %v1253, 1e-05
        %v1255 = vrsqrt.pop %v1254
        %v1256 = vmul.f32 %v1255, %v1254
        %v1257 = vmul.f32 %v1256, %v1255
        %v1258 = vmul.f32 0.5, %v1257
        %v1259 = vsub.f32 1.5, %v1258
        %v1260 = vmul.f32 %v1255, %v1259
        %vm1261 = vweird.f32 %v1254
        %vm1262 = vweird.f32 %v1255
        %vm1263 = vmor %vm1261, %vm1262
        %v1264 = vsel %vm1263, %v1255, %v1260
        %v1265 = vmul.f32 %v1248, %v1264
        %v1267 = vperm.slane %v1235, 0
        %v1269 = vmul.f32 %v1265, %v1267
        %v1271 = vperm.slane %v1236, 0
        %v1273 = vadd.f32 %v1269, %v1271
        %v1274 = vpack.c.bf16 %v1273, %v1273
        %v1275 = vld [vmem:[%s684] sm:$0xf]
        %v1276 = vld [vmem:[%s684 + $0x4] sm:$0xf]
        %v1277 = vld [vmem:[%s684 + $0x8] sm:$0xf]
        %v1278 = vld [vmem:[%s684 + $0xc] sm:$0xf]
        %v1279 = vld [vmem:[%s687] sm:$0x1]
        %v1281 = vperm.slane %v1279, 0
        %v1287 = vunpack.c.l.b16 %v1275
        %v1288 = vunpack.c.l.b16 %v1276
        %v1289 = vunpack.c.l.b16 %v1277
        %v1290 = vunpack.c.l.b16 %v1278
        %v1291 = vpack.c.b16 %v1288, %v1287
        %v1292 = vpack.c.b16 %v1290, %v1289
        %v1296 = vsel %vm740, %v1274, 0
        %1298 = vmatpush.bf16.msra.mxu0 0
        %1299 = vmatpush.bf16.msra.mxu0 0
        %1300 = vmatpush.bf16.msra.mxu0 0
        %1301 = vmatpush.bf16.msra.mxu0 0
        %1302 = vmatpush.bf16.msra.mxu0 0
        %1303 = vmatpush.bf16.msra.mxu0 0
        %1304 = vmatpush.bf16.msra.mxu0 %v1292
        %1305 = vmatpush.bf16.msra.mxu0 %v1291
        %1306 = vmatmul.bf16.gmra.mxu0 %v1296
        %v1307 = vpop.f32.mrf.mxu0
        %v1308 = vadd.f32 %v1281, %v1307
        %v1309 = vpop.f32.mrf.mxu0
        %1310 = vdwg.mxu0
        %v1311 = vmax.f32 %v1308, 0.0
        %v1312 = vpack.c.bf16 %v1311, %v1311
        %v1313 = vld [vmem:[%s692] sm:$0xf]
        %v1314 = vld [vmem:[%s692 + $0x4] sm:$0xf]
        %v1315 = vld [vmem:[%s692 + $0x8] sm:$0xf]
        %v1316 = vld [vmem:[%s692 + $0xc] sm:$0xf]
        %v1317 = vld [vmem:[%s692 + $0x10] sm:$0xf]
        %v1318 = vld [vmem:[%s692 + $0x14] sm:$0xf]
        %v1319 = vld [vmem:[%s692 + $0x18] sm:$0xf]
        %v1320 = vld [vmem:[%s692 + $0x1c] sm:$0xf]
        %v1321 = vld [vmem:[%s692 + $0x20] sm:$0xf]
        %v1322 = vld [vmem:[%s692 + $0x24] sm:$0xf]
        %v1323 = vld [vmem:[%s692 + $0x28] sm:$0xf]
        %v1324 = vld [vmem:[%s692 + $0x2c] sm:$0xf]
        %v1325 = vld [vmem:[%s692 + $0x30] sm:$0xf]
        %v1326 = vld [vmem:[%s692 + $0x34] sm:$0xf]
        %v1327 = vld [vmem:[%s692 + $0x38] sm:$0xf]
        %v1328 = vld [vmem:[%s692 + $0x3c] sm:$0xf]
        %v1329 = vld [vmem:[%s695] sm:$0x1]
        %v1331 = vperm.slane %v1329, 0
        %v1349 = vunpack.c.l.b16 %v1313
        %v1350 = vunpack.c.l.b16 %v1314
        %v1351 = vunpack.c.l.b16 %v1315
        %v1352 = vunpack.c.l.b16 %v1316
        %v1353 = vunpack.c.l.b16 %v1317
        %v1354 = vunpack.c.l.b16 %v1318
        %v1355 = vunpack.c.l.b16 %v1319
        %v1356 = vunpack.c.l.b16 %v1320
        %v1357 = vunpack.c.l.b16 %v1321
        %v1358 = vunpack.c.l.b16 %v1322
        %v1359 = vunpack.c.l.b16 %v1323
        %v1360 = vunpack.c.l.b16 %v1324
        %v1361 = vunpack.c.l.b16 %v1325
        %v1362 = vunpack.c.l.b16 %v1326
        %v1363 = vunpack.c.l.b16 %v1327
        %v1364 = vunpack.c.l.b16 %v1328
        %v1365 = vpack.c.b16 %v1350, %v1349
        %v1366 = vpack.c.b16 %v1352, %v1351
        %v1367 = vpack.c.b16 %v1354, %v1353
        %v1368 = vpack.c.b16 %v1356, %v1355
        %v1369 = vpack.c.b16 %v1358, %v1357
        %v1370 = vpack.c.b16 %v1360, %v1359
        %v1371 = vpack.c.b16 %v1362, %v1361
        %v1372 = vpack.c.b16 %v1364, %v1363
        %1381 = vmatpush.bf16.msra.mxu0 %v1372
        %1382 = vmatpush.bf16.msra.mxu0 %v1371
        %1383 = vmatpush.bf16.msra.mxu0 %v1370
        %1384 = vmatpush.bf16.msra.mxu0 %v1369
        %1385 = vmatpush.bf16.msra.mxu0 %v1368
        %1386 = vmatpush.bf16.msra.mxu0 %v1367
        %1387 = vmatpush.bf16.msra.mxu0 %v1366
        %1388 = vmatpush.bf16.msra.mxu0 %v1365
        %1389 = vmatmul.bf16.gmra.mxu0 %v1312
        %v1390 = vpop.f32.mrf.mxu0
        %v1391 = vadd.f32 %v1331, %v1390
        %v1392 = vpop.f32.mrf.mxu0
        %1393 = vdwg.mxu0
        %v1394 = vadd.f32 %v1391, %v1273
        %v1395 = vld [vmem:[%s698] sm:$0x1]
        %v1396 = vld [vmem:[%s701] sm:$0x1]
        %v1397 = vsel %vm740, %v1394, 0.0
        %1398 = vadd.xlane.f32.xlu0 %v1397
        %v1399 = vpop.xlane.xlu0 %1398
        %v1400 = vmul.f32 %v1399, %v1246
        %v1401 = vsub.f32 %v1394, %v1400
        %v1402 = vmul.f32 %v1401, %v1401
        %v1403 = vsel %vm740, %v1402, 0.0
        %1404 = vadd.xlane.f32.xlu0 %v1403
        %v1405 = vpop.xlane.xlu0 %1404
        %v1406 = vmul.f32 %v1405, %v1246
        %v1407 = vadd.f32 %v1406, 1e-05
        %v1408 = vrsqrt.pop %v1407
        %v1409 = vmul.f32 %v1408, %v1407
        %v1410 = vmul.f32 %v1409, %v1408
        %v1411 = vmul.f32 0.5, %v1410
        %v1412 = vsub.f32 1.5, %v1411
        %v1413 = vmul.f32 %v1408, %v1412
        %vm1414 = vweird.f32 %v1407
        %vm1415 = vweird.f32 %v1408
        %vm1416 = vmor %vm1414, %vm1415
        %v1417 = vsel %vm1416, %v1408, %v1413
        %v1418 = vmul.f32 %v1401, %v1417
        %v1420 = vperm.slane %v1395, 0
        %v1422 = vmul.f32 %v1418, %v1420
        %v1424 = vperm.slane %v1396, 0
        %v1426 = vadd.f32 %v1422, %v1424
        %1427 = vst.msk [vmem:[#allocation2] sm:$0xff] %vm740, %v1426
        %p1428 = scmp.eq.s32.totalorder %s37, 7
        // Predicated region
        $region89: #{gen_trf_forward.1} parent=79 // pred_check
          %p1429 = pneg %p1428
        $region90: #{gen_trf_forward.1} parent=79 // pred_check_branch
          %1431 = sbr.rel (%p1429) target = $region92
        $region91: #{gen_trf_forward.1} parent=79 // pred_region
          %v1432 = vpack.c.bf16 %v1426, %v1426
          %v1433 = vld [vmem:[%s13] sm:$0xf]
          %v1434 = vld [vmem:[%s13 + $0x4] sm:$0xf]
          %v1435 = vld [vmem:[%s13 + $0x8] sm:$0xf]
          %v1436 = vld [vmem:[%s13 + $0xc] sm:$0xf]
          %v1437 = vld [vmem:[%s14] sm:$0x1]
          %v1439 = vperm.slane %v1437, 0
          %v1445 = vunpack.c.l.b16 %v1433
          %v1446 = vunpack.c.l.b16 %v1434
          %v1447 = vunpack.c.l.b16 %v1435
          %v1448 = vunpack.c.l.b16 %v1436
          %v1449 = vpack.c.b16 %v1446, %v1445
          %v1450 = vpack.c.b16 %v1448, %v1447
          %v1454 = vsel %vm740, %v1432, 0
          %1456 = vmatpush.bf16.msra.mxu0 0
          %1457 = vmatpush.bf16.msra.mxu0 0
          %1458 = vmatpush.bf16.msra.mxu0 0
          %1459 = vmatpush.bf16.msra.mxu0 0
          %1460 = vmatpush.bf16.msra.mxu0 0
          %1461 = vmatpush.bf16.msra.mxu0 0
          %1462 = vmatpush.bf16.msra.mxu0 %v1450
          %1463 = vmatpush.bf16.msra.mxu0 %v1449
          %1464 = vmatmul.bf16.gmra.mxu0 %v1454
          %v1465 = vpop.f32.mrf.mxu0
          %v1466 = vadd.f32 %v1439, %v1465
          %v1467 = vpop.f32.mrf.mxu0
          %1468 = vdwg.mxu0
          %vm1469 = vcmask 130048
          %v1470 = vsel %vm1469, %v1466, -inf
          %1471 = vmax.xlane.f32.xlu0 %v1470
          %v1472 = vpop.xlane.xlu0 %1471
          %v1473 = vsub.f32 %v1466, %v1472
          %v1474 = vmul.f32 %v1473, 1.442695
          %v1475 = vpow.pop %v1474
          %v1476 = vsel %vm1469, %v1475, 0.0
          %1477 = vadd.xlane.f32.xlu0 %v1476
          %v1478 = vpop.xlane.xlu0 %1477
          %v1479 = vlog2.pop %v1478
          %v1480 = vmul.f32 %v1479, 0.6931472
          %v1481 = vsub.f32 %v1473, %v1480
          %1482 = vst.msk [vmem:[%s661] sm:$0xff] %vm1469, %v1481
        $region92: #{gen_trf_forward.1} parent=79 // pred_fallthru
          _
        %s1483 = sand.u32 %s427, 1
        %s1484 = scalar_lea.sflag [#allocation5], %s1483
        %s1485 = sand.u32 %s427, 1
        %s1486 = smul.addr %s1485, 8
        %s1487 = scalar_lea.vmem [#allocation6], %s1486
        // Predicated region
        $region93: #{gen_trf_forward.1} parent=79 // pred_check
          %p1488 = pneg %p437
        $region94: #{gen_trf_forward.1} parent=79 // pred_check_branch
          %1490 = sbr.rel (%p1488) target = $region96
        $region95: #{gen_trf_forward.1} parent=79 // pred_region
          %1492 = vsyncadd %s1484, 0
          %s1493 = smul.addr %s36, 8
          %s1494 = scalar_lea.hbm %s15, %s1493
          %s1496 = sshll.u32 %s1487, 4
          %s1497 = int_to_ptr.vmem [resolvable:$true] %s1496
          %s1498 = sshll.u32 %s1494, 4
          %s1499 = int_to_ptr.hbm [resolvable:$true] %s1498
          %1501 = dma.vmem_to_hbm [thread:$0]  %s1497, 128, %s1499, %s1484
        $region96: #{gen_trf_forward.1} parent=79 // pred_fallthru
          _
      $region80: #{gen_trf_forward.1} parent=5 // pred_fallthru
        _
      %p1502 = scmp.le.s32.totalorder 2, %s27
      // Predicated region
      $region97: #{gen_trf_forward.1} parent=5 // pred_check
        %p1503 = pneg %p1502
      $region98: #{gen_trf_forward.1} parent=5 // pred_check_branch
        %1505 = sbr.rel (%p1503) target = $region100
      $region99: #{gen_trf_forward.1} parent=5 // pred_region
        %s1506 = ssub.s32 %s27, 2
        // Predicated region
        $region101: #{gen_trf_forward.1} parent=99 // pred_check
          %p1507 = pneg %p443
        $region102: #{gen_trf_forward.1} parent=99 // pred_check_branch
          %1509 = sbr.rel (%p1507) target = $region104
        $region103: #{gen_trf_forward.1} parent=99 // pred_region
          %s1510 = sand.u32 %s428, 1
          %s1511 = scalar_lea.sflag [#allocation5], %s1510
          %s1512 = sand.u32 %s428, 1
          %s1513 = smul.addr %s1512, 8
          %s1514 = scalar_lea.vmem [#allocation6], %s1513
          %1516 = dma.done %s1511, 128
        $region104: #{gen_trf_forward.1} parent=99 // pred_fallthru
          _
      $region100: #{gen_trf_forward.1} parent=5 // pred_fallthru
        _
    $region6: #{gen_trf_forward.1} parent=1 // loop_footer
      %s31 = sadd.s32 1, %s27
    $region7: #{gen_trf_forward.1} parent=1 // loop_footer_branch
      %26 = sbr.rel target = $region3
    $region8: #{gen_trf_forward.1} parent=1 // loop_exit
      _
    %1517 = vsyncpa [#allocation4], 1
    %s1518 = scalar_lea.sflag [#allocation4], 1
    %1519 = vsyncpa %s1518, 1
    %1520 = vsyncpa [#allocation5], 1
    %s1521 = scalar_lea.sflag [#allocation5], 1
    %1522 = vsyncpa %s1521, 1

</llo_original>
